<compile_context>
chip_gen: v7x
topology: tpu7x:2x2x1
jax: 0.10.0
libtpu: 0.0.40
codegen_flags: <defaults>
</compile_context>

<pallas_src>
import functools
import math

import jax
import jax.numpy as jnp
from jax import lax
from jax.experimental import pallas as pl
from jax.experimental.pallas import tpu as pltpu


def bert_attention_kernel(
    hq_ref,            # [1, TQ, H]   query-row tile of hidden_states
    hkv_ref,           # [1, S,  H]   full sequence for this batch row (K/V)
    mask_ref,          # [1, 1,  S]   additive key mask
    wq_ref, bq_ref,    # [NG, H, Gd], [NG, 1, Gd]  resident (Wq/bq pre-scaled)
    wk_ref, bk_ref,    # [NG, H, Gd], [NG, 1, Gd]  resident
    wv_ref, bv_ref,    # [NG, H, Gd], [NG, 1, Gd]  resident
    wo_ref,            # [NG, Gd, H]               resident
    bo_ref,            # [1, H]
    lng_ref, lnb_ref,  # [1, H]  LayerNorm gamma / beta
    out_ref,           # [1, TQ, H]
    acc_ref,           # VMEM [TQ, H] f32          output-projection accumulator
    kc_ref,            # VMEM [NG, S, Gd] mxu dt   per-batch-row K cache
    vc_ref,            # VMEM [NG, S, Gd] mxu dt   per-batch-row V cache
    *, group_heads, head_dim, eps, mxu_dtype):
  qi = pl.program_id(1)
  g = pl.program_id(2)
  dt = mxu_dtype
  G, d = group_heads, head_dim

  @pl.when(g == 0)
  def _init():
    acc_ref[...] = jnp.zeros_like(acc_ref)

  # K/V projections for this head group: computed once per batch row at the
  # first query tile, cached in VMEM, reused for qi > 0.
  @pl.when(qi == 0)
  def _fill_kv():
    h_kv = hkv_ref[0].astype(dt)                                   # [S, H]
    k = (jnp.dot(h_kv, wk_ref[g].astype(dt),
                 preferred_element_type=jnp.float32)
         + bk_ref[g].astype(jnp.float32))                          # [S, Gd]
    v = (jnp.dot(h_kv, wv_ref[g].astype(dt),
                 preferred_element_type=jnp.float32)
         + bv_ref[g].astype(jnp.float32))                          # [S, Gd]
    kc_ref[g] = k.astype(dt)
    vc_ref[g] = v.astype(dt)

  # Q projection for this query tile / head group (1/sqrt(d) already folded
  # into Wq and bq host-side).
  h_q = hq_ref[0].astype(dt)                                       # [TQ, H]
  q = (jnp.dot(h_q, wq_ref[g].astype(dt),
               preferred_element_type=jnp.float32)
       + bq_ref[g].astype(jnp.float32))                            # [TQ, Gd]
  q_dt = q.astype(dt)

  k_grp = kc_ref[g]                                                # [S, Gd]
  v_grp = vc_ref[g]                                                # [S, Gd]
  mask = mask_ref[0].astype(jnp.float32)                           # [1, S]

  # Per-head attention inside the group (static unrolled loop, G <= 4).
  ctx_parts = []
  for h in range(G):
    lo, hi = h * d, (h + 1) * d
    qh = q_dt[:, lo:hi]                                            # [TQ, d]
    kh = k_grp[:, lo:hi]                                           # [S,  d]
    vh = v_grp[:, lo:hi]                                           # [S,  d]
    # scores = q k^T + mask  ('qd,kd->qk', scale already folded into q)
    s_h = lax.dot_general(qh, kh, (((1,), (1,)), ((), ())),
                          preferred_element_type=jnp.float32) + mask
    m_h = jnp.max(s_h, axis=-1, keepdims=True)
    p_h = jnp.exp(s_h - m_h)
    p_h = p_h * pl.reciprocal(jnp.sum(p_h, axis=-1, keepdims=True),
                              approx=False)
    # TODO(synk): attention-probs dropout / hidden dropout omitted (eval mode).
    ctx_parts.append(jnp.dot(p_h.astype(dt), vh,
                             preferred_element_type=jnp.float32))  # [TQ, d]
  ctx = ctx_parts[0] if G == 1 else jnp.concatenate(ctx_parts, axis=-1)

  # This group's slice of the output projection (contraction depth = G*d).
  acc_ref[...] += jnp.dot(ctx.astype(dt), wo_ref[g].astype(dt),
                          preferred_element_type=jnp.float32)      # [TQ, H]

  @pl.when(g == pl.num_programs(2) - 1)
  def _finalize():
    x = (acc_ref[...] + bo_ref[...].astype(jnp.float32)
         + hq_ref[0].astype(jnp.float32))                          # + residual
    u = jnp.mean(x, axis=-1, keepdims=True)
    var = jnp.mean(jnp.square(x - u), axis=-1, keepdims=True)
    xn = (x - u) * lax.rsqrt(var + eps)
    y = (lng_ref[...].astype(jnp.float32) * xn
         + lnb_ref[...].astype(jnp.float32))
    out_ref[0] = y.astype(out_ref.dtype)


def _pick_q_tile(seq_len):
  """Largest query-row tile <= 512 that divides seq_len (8-aligned when tiling)."""
  if seq_len <= 512:
    return seq_len
  for t in (512, 256, 128, 64, 32, 16, 8):
    if seq_len % t == 0:
      return t
  return seq_len   # fall back to one full-sequence tile


def _pick_head_group(num_heads, head_dim, target_cols=256):
  """Largest divisor G of num_heads with G*head_dim <= target_cols (>=1)."""
  g = 1
  for cand in range(1, num_heads + 1):
    if num_heads % cand == 0 and cand * head_dim <= target_cols:
      g = cand
  return g


def bert_attention(hidden_states, attention_mask, params, *, num_heads,
                   eps=1e-12):
  """hidden_states [B,S,H]; attention_mask [B,S] additive (0 keep / -1e4 mask)."""
  B, S, H = hidden_states.shape
  assert H % num_heads == 0
  d = H // num_heads
  tq = _pick_q_tile(S)
  n_q = S // tq
  G = _pick_head_group(num_heads, d)
  n_g = num_heads // G
  gd = G * d

  # bf16 MXU operands when the layer runs in f32 (f32 accumulation kept).
  mxu_dtype = (jnp.bfloat16 if hidden_states.dtype == jnp.float32
               else hidden_states.dtype)

  scale = 1.0 / math.sqrt(d)

  def split_cols(w):                     # [H, H] -> [NG, H, G*d]
    return jnp.transpose(w.reshape(H, n_g, gd), (1, 0, 2))

  wq_h = split_cols(params['wq'] * scale).astype(mxu_dtype)   # scale folded in
  wk_h = split_cols(params['wk']).astype(mxu_dtype)
  wv_h = split_cols(params['wv']).astype(mxu_dtype)
  wo_h = params['wo'].reshape(n_g, gd, H).astype(mxu_dtype)
  bq_h = (params['bq'] * scale).reshape(n_g, 1, gd)
  bk_h = params['bk'].reshape(n_g, 1, gd)
  bv_h = params['bv'].reshape(n_g, 1, gd)
  mask3 = attention_mask.reshape(B, 1, S)

  # Projection weights/biases: full blocks with constant index_maps => fetched
  # from HBM once and resident in VMEM for the entire call.
  res_w = pl.BlockSpec((n_g, H, gd), lambda b, qi, g: (0, 0, 0))
  res_b = pl.BlockSpec((n_g, 1, gd), lambda b, qi, g: (0, 0, 0))
  res_wo = pl.BlockSpec((n_g, gd, H), lambda b, qi, g: (0, 0, 0))
  full_h = pl.BlockSpec((1, H), lambda b, qi, g: (0, 0))

  in_specs = [
      pl.BlockSpec((1, tq, H), lambda b, qi, g: (b, qi, 0)),   # query tile
      pl.BlockSpec((1, S, H), lambda b, qi, g: (b, 0, 0)),     # full sequence
      pl.BlockSpec((1, 1, S), lambda b, qi, g: (b, 0, 0)),     # additive mask
      res_w, res_b,        # Wq, bq   (pre-scaled)
      res_w, res_b,        # Wk, bk
      res_w, res_b,        # Wv, bv
      res_wo,              # Wo
      full_h,              # bo
      full_h, full_h,      # LN gamma, beta
  ]
  out_spec = pl.BlockSpec((1, tq, H), lambda b, qi, g: (b, qi, 0))

  itemsize = jnp.dtype(hidden_states.dtype).itemsize
  w_itemsize = jnp.dtype(mxu_dtype).itemsize
  flops = 8 * B * S * H * H + 4 * B * S * S * H
  bytes_accessed = ((3 * B * S * H + B * S) * itemsize
                    + (4 * H * H + 6 * H) * w_itemsize)
  cost = pl.CostEstimate(flops=flops,
                         transcendentals=B * num_heads * S * S,
                         bytes_accessed=bytes_accessed)

  kernel = functools.partial(bert_attention_kernel, group_heads=G, head_dim=d,
                             eps=eps, mxu_dtype=mxu_dtype)

  return pl.pallas_call(
      kernel,
      out_shape=jax.ShapeDtypeStruct((B, S, H), hidden_states.dtype),
      grid_spec=pltpu.PrefetchScalarGridSpec(
          num_scalar_prefetch=0,
          grid=(B, n_q, n_g),
          in_specs=in_specs,
          out_specs=out_spec,
          scratch_shapes=[
              pltpu.VMEM((tq, H), jnp.float32),       # output-proj accumulator
              pltpu.VMEM((n_g, S, gd), mxu_dtype),    # K cache (per batch row)
              pltpu.VMEM((n_g, S, gd), mxu_dtype),    # V cache (per batch row)
          ]),
      compiler_params=pltpu.CompilerParams(
          # Only the batch axis is megacore-sharded; qi must run sequentially
          # on one core so the K/V cache filled at qi==0 is visible for qi>0.
          dimension_semantics=("parallel", "arbitrary", "arbitrary"),
          # <= 48 MiB keeps headroom under v7x's 64 MiB physical VMEM; well
          # within v5e/v6e's 128 MiB.
          vmem_limit_bytes=48 * 1024 * 1024),
      cost_estimate=cost,
  )(hidden_states, hidden_states, mask3,
    wq_h, bq_h, wk_h, bk_h, wv_h, bv_h,
    wo_h, params['bo'], params['ln_g'], params['ln_b'])


def init_params(key, hidden, init_range=0.02, dtype=jnp.float32):
  ks = jax.random.split(key, 4)
  def w(k):
    return (init_range * jax.random.normal(k, (hidden, hidden))).astype(dtype)
  def b():
    return jnp.zeros((1, hidden), dtype)
  return dict(
      wq=w(ks[0]), bq=b(),
      wk=w(ks[1]), bk=b(),
      wv=w(ks[2]), bv=b(),
      wo=w(ks[3]), bo=b(),
      ln_g=jnp.ones((1, hidden), dtype),
      ln_b=jnp.zeros((1, hidden), dtype),
  )


if __name__ == "__main__":
  B, S, H, NH = 2, 8, 32, 4   # batch, seq, hidden, heads
  key = jax.random.PRNGKey(0)
  k_h, k_p = jax.random.split(key)

  hidden_states = jax.random.normal(k_h, (B, S, H), dtype=jnp.float32)
  # Additive mask: last key position masked out, rest visible.
  attention_mask = jnp.where(jnp.arange(S)[None, :] < S - 1, 0.0, -10000.0)
  attention_mask = jnp.broadcast_to(attention_mask, (B, S)).astype(jnp.float32)

  params = init_params(k_p, H)

  out = bert_attention(hidden_states, attention_mask, params,
                       num_heads=NH, eps=1e-12)
  jax.block_until_ready(out)
  assert out.shape == (B, S, H)
  assert bool(jnp.isfinite(out).all())
  print("KERNEL_OK")
</pallas_src>

<mosaic_0001>
module attributes {stable_mosaic.version = 11 : i64} {
  func.func @bert_attention_kernel(%arg0: i32, %arg1: i32, %arg2: i32, %arg3: memref<1x8x32xf32, #tpu.memory_space<vmem>>, %arg4: memref<1x8x32xf32, #tpu.memory_space<vmem>>, %arg5: memref<1x1x8xf32, #tpu.memory_space<vmem>>, %arg6: memref<1x32x32xbf16, #tpu.memory_space<vmem>>, %arg7: memref<1x1x32xf32, #tpu.memory_space<vmem>>, %arg8: memref<1x32x32xbf16, #tpu.memory_space<vmem>>, %arg9: memref<1x1x32xf32, #tpu.memory_space<vmem>>, %arg10: memref<1x32x32xbf16, #tpu.memory_space<vmem>>, %arg11: memref<1x1x32xf32, #tpu.memory_space<vmem>>, %arg12: memref<1x32x32xbf16, #tpu.memory_space<vmem>>, %arg13: memref<1x32xf32, #tpu.memory_space<vmem>>, %arg14: memref<1x32xf32, #tpu.memory_space<vmem>>, %arg15: memref<1x32xf32, #tpu.memory_space<vmem>>, %arg16: memref<1x8x32xf32, #tpu.memory_space<vmem>>, %arg17: memref<8x32xf32, #tpu.memory_space<vmem>>, %arg18: memref<1x8x32xbf16, #tpu.memory_space<vmem>>, %arg19: memref<1x8x32xbf16, #tpu.memory_space<vmem>>) attributes {dimension_semantics = [#tpu.dimension_semantics<parallel>, #tpu.dimension_semantics<arbitrary>, #tpu.dimension_semantics<arbitrary>], iteration_bounds = array<i64: 2, 1, 1>, scalar_prefetch = 0 : i64, scratch_operands = 3 : i64, tpu.core_type = #tpu.core_type<tc>, window_params = [{transform_indices = @transform_0, window_bounds = array<i64: 1, 8, 32>}, {transform_indices = @transform_1, window_bounds = array<i64: 1, 8, 32>}, {transform_indices = @transform_2, window_bounds = array<i64: 1, 1, 8>}, {pipeline_mode = #tpu.pipeline_mode<synchronous>, transform_indices = @transform_3, window_bounds = array<i64: 1, 32, 32>}, {pipeline_mode = #tpu.pipeline_mode<synchronous>, transform_indices = @transform_4, window_bounds = array<i64: 1, 1, 32>}, {pipeline_mode = #tpu.pipeline_mode<synchronous>, transform_indices = @transform_5, window_bounds = array<i64: 1, 32, 32>}, {pipeline_mode = #tpu.pipeline_mode<synchronous>, transform_indices = @transform_6, window_bounds = array<i64: 1, 1, 32>}, {pipeline_mode = #tpu.pipeline_mode<synchronous>, transform_indices = @transform_7, window_bounds = array<i64: 1, 32, 32>}, {pipeline_mode = #tpu.pipeline_mode<synchronous>, transform_indices = @transform_8, window_bounds = array<i64: 1, 1, 32>}, {pipeline_mode = #tpu.pipeline_mode<synchronous>, transform_indices = @transform_9, window_bounds = array<i64: 1, 32, 32>}, {pipeline_mode = #tpu.pipeline_mode<synchronous>, transform_indices = @transform_10, window_bounds = array<i64: 1, 32>}, {pipeline_mode = #tpu.pipeline_mode<synchronous>, transform_indices = @transform_11, window_bounds = array<i64: 1, 32>}, {pipeline_mode = #tpu.pipeline_mode<synchronous>, transform_indices = @transform_12, window_bounds = array<i64: 1, 32>}, {transform_indices = @transform_13, window_bounds = array<i64: 1, 8, 32>}]} {
    %c0_i32 = arith.constant 0 : i32
    %0 = arith.cmpi eq, %arg2, %c0_i32 : i32
    %1 = arith.extui %0 : i1 to i32
    %c0_i32_0 = arith.constant 0 : i32
    %2 = arith.cmpi ne, %1, %c0_i32_0 : i32
    scf.if %2 {
      %cst_41 = arith.constant 0.000000e+00 : f32
      %111 = vector.broadcast %cst_41 : f32 to vector<8x32xf32>
      %c0_42 = arith.constant 0 : index
      %c0_43 = arith.constant 0 : index
      %112 = vector.load %arg17[%c0_42, %c0_43] : memref<8x32xf32, #tpu.memory_space<vmem>>, vector<8x32xf32>
      tpu.vector_store %arg17[%c0_42, %c0_43], %111 {strides = array<i32>} : memref<8x32xf32, #tpu.memory_space<vmem>>, vector<8x32xf32>,
    } else {
    }
    %c0_i32_1 = arith.constant 0 : i32
    %3 = arith.cmpi eq, %arg1, %c0_i32_1 : i32
    %4 = arith.extui %3 : i1 to i32
    %c0_i32_2 = arith.constant 0 : i32
    %5 = arith.cmpi ne, %4, %c0_i32_2 : i32
    scf.if %5 {
      %c0_41 = arith.constant 0 : index
      %c0_42 = arith.constant 0 : index
      %c0_43 = arith.constant 0 : index
      %111 = vector.load %arg4[%c0_41, %c0_42, %c0_43] : memref<1x8x32xf32, #tpu.memory_space<vmem>>, vector<1x8x32xf32>
      %112 = vector.shape_cast %111 : vector<1x8x32xf32> to vector<8x32xf32>
      %113 = arith.truncf %112 : vector<8x32xf32> to vector<8x32xbf16>
      %114 = arith.index_cast %arg2 : i32 to index
      %c0_44 = arith.constant 0 : index
      %c0_45 = arith.constant 0 : index
      %115 = vector.load %arg8[%114, %c0_44, %c0_45] : memref<1x32x32xbf16, #tpu.memory_space<vmem>>, vector<1x32x32xbf16>
      %116 = vector.shape_cast %115 : vector<1x32x32xbf16> to vector<32x32xbf16>
      %cst_46 = arith.constant dense<0.000000e+00> : vector<8x32xf32>
      %117 = tpu.matmul %113, %116, %cst_46 {dimension_numbers = #tpu.dot_dimension_numbers<[1], [0], [0], [1], [0, 0, 1, 1], [], []>} : vector<8x32xbf16>, vector<32x32xbf16>, vector<8x32xf32> -> vector<8x32xf32>
      %118 = arith.index_cast %arg2 : i32 to index
      %c0_47 = arith.constant 0 : index
      %c0_48 = arith.constant 0 : index
      %119 = vector.load %arg9[%118, %c0_47, %c0_48] : memref<1x1x32xf32, #tpu.memory_space<vmem>>, vector<1x1x32xf32>
      %120 = vector.shape_cast %119 : vector<1x1x32xf32> to vector<1x32xf32>
      %121 = vector.broadcast %120 : vector<1x32xf32> to vector<8x32xf32>
      %122 = arith.addf %117, %121 : vector<8x32xf32>
      %123 = arith.index_cast %arg2 : i32 to index
      %c0_49 = arith.constant 0 : index
      %c0_50 = arith.constant 0 : index
      %124 = vector.load %arg10[%123, %c0_49, %c0_50] : memref<1x32x32xbf16, #tpu.memory_space<vmem>>, vector<1x32x32xbf16>
      %125 = vector.shape_cast %124 : vector<1x32x32xbf16> to vector<32x32xbf16>
      %cst_51 = arith.constant dense<0.000000e+00> : vector<8x32xf32>
      %126 = tpu.matmul %113, %125, %cst_51 {dimension_numbers = #tpu.dot_dimension_numbers<[1], [0], [0], [1], [0, 0, 1, 1], [], []>} : vector<8x32xbf16>, vector<32x32xbf16>, vector<8x32xf32> -> vector<8x32xf32>
      %127 = arith.index_cast %arg2 : i32 to index
      %c0_52 = arith.constant 0 : index
      %c0_53 = arith.constant 0 : index
      %128 = vector.load %arg11[%127, %c0_52, %c0_53] : memref<1x1x32xf32, #tpu.memory_space<vmem>>, vector<1x1x32xf32>
      %129 = vector.shape_cast %128 : vector<1x1x32xf32> to vector<1x32xf32>
      %130 = vector.broadcast %129 : vector<1x32xf32> to vector<8x32xf32>
      %131 = arith.addf %126, %130 : vector<8x32xf32>
      %132 = arith.truncf %122 : vector<8x32xf32> to vector<8x32xbf16>
      %133 = arith.index_cast %arg2 : i32 to index
      %c0_54 = arith.constant 0 : index
      %c0_55 = arith.constant 0 : index
      %134 = vector.load %arg18[%133, %c0_54, %c0_55] : memref<1x8x32xbf16, #tpu.memory_space<vmem>>, vector<1x8x32xbf16>
      %135 = vector.shape_cast %134 : vector<1x8x32xbf16> to vector<8x32xbf16>
      %136 = vector.shape_cast %132 : vector<8x32xbf16> to vector<1x8x32xbf16>
      tpu.vector_store %arg18[%133, %c0_54, %c0_55], %136 {strides = array<i32>} : memref<1x8x32xbf16, #tpu.memory_space<vmem>>, vector<1x8x32xbf16>,
      %137 = arith.truncf %131 : vector<8x32xf32> to vector<8x32xbf16>
      %138 = arith.index_cast %arg2 : i32 to index
      %c0_56 = arith.constant 0 : index
      %c0_57 = arith.constant 0 : index
      %139 = vector.load %arg19[%138, %c0_56, %c0_57] : memref<1x8x32xbf16, #tpu.memory_space<vmem>>, vector<1x8x32xbf16>
      %140 = vector.shape_cast %139 : vector<1x8x32xbf16> to vector<8x32xbf16>
      %141 = vector.shape_cast %137 : vector<8x32xbf16> to vector<1x8x32xbf16>
      tpu.vector_store %arg19[%138, %c0_56, %c0_57], %141 {strides = array<i32>} : memref<1x8x32xbf16, #tpu.memory_space<vmem>>, vector<1x8x32xbf16>,
    } else {
    }
    %c0 = arith.constant 0 : index
    %c0_3 = arith.constant 0 : index
    %c0_4 = arith.constant 0 : index
    %6 = vector.load %arg3[%c0, %c0_3, %c0_4] : memref<1x8x32xf32, #tpu.memory_space<vmem>>, vector<1x8x32xf32>
    %7 = vector.shape_cast %6 : vector<1x8x32xf32> to vector<8x32xf32>
    %8 = arith.truncf %7 : vector<8x32xf32> to vector<8x32xbf16>
    %9 = arith.index_cast %arg2 : i32 to index
    %c0_5 = arith.constant 0 : index
    %c0_6 = arith.constant 0 : index
    %10 = vector.load %arg6[%9, %c0_5, %c0_6] : memref<1x32x32xbf16, #tpu.memory_space<vmem>>, vector<1x32x32xbf16>
    %11 = vector.shape_cast %10 : vector<1x32x32xbf16> to vector<32x32xbf16>
    %cst = arith.constant dense<0.000000e+00> : vector<8x32xf32>
    %12 = tpu.matmul %8, %11, %cst {dimension_numbers = #tpu.dot_dimension_numbers<[1], [0], [0], [1], [0, 0, 1, 1], [], []>} : vector<8x32xbf16>, vector<32x32xbf16>, vector<8x32xf32> -> vector<8x32xf32>
    %13 = arith.index_cast %arg2 : i32 to index
    %c0_7 = arith.constant 0 : index
    %c0_8 = arith.constant 0 : index
    %14 = vector.load %arg7[%13, %c0_7, %c0_8] : memref<1x1x32xf32, #tpu.memory_space<vmem>>, vector<1x1x32xf32>
    %15 = vector.shape_cast %14 : vector<1x1x32xf32> to vector<1x32xf32>
    %16 = vector.broadcast %15 : vector<1x32xf32> to vector<8x32xf32>
    %17 = arith.addf %12, %16 : vector<8x32xf32>
    %18 = arith.truncf %17 : vector<8x32xf32> to vector<8x32xbf16>
    %19 = arith.index_cast %arg2 : i32 to index
    %c0_9 = arith.constant 0 : index
    %c0_10 = arith.constant 0 : index
    %20 = vector.load %arg18[%19, %c0_9, %c0_10] : memref<1x8x32xbf16, #tpu.memory_space<vmem>>, vector<1x8x32xbf16>
    %21 = vector.shape_cast %20 : vector<1x8x32xbf16> to vector<8x32xbf16>
    %22 = arith.index_cast %arg2 : i32 to index
    %c0_11 = arith.constant 0 : index
    %c0_12 = arith.constant 0 : index
    %23 = vector.load %arg19[%22, %c0_11, %c0_12] : memref<1x8x32xbf16, #tpu.memory_space<vmem>>, vector<1x8x32xbf16>
    %24 = vector.shape_cast %23 : vector<1x8x32xbf16> to vector<8x32xbf16>
    %c0_13 = arith.constant 0 : index
    %c0_14 = arith.constant 0 : index
    %c0_15 = arith.constant 0 : index
    %25 = vector.load %arg5[%c0_13, %c0_14, %c0_15] : memref<1x1x8xf32, #tpu.memory_space<vmem>>, vector<1x1x8xf32>
    %26 = vector.shape_cast %25 : vector<1x1x8xf32> to vector<1x8xf32>
    %27 = vector.extract_strided_slice %18 {offsets = [0, 0], sizes = [8, 8], strides = [1, 1]} : vector<8x32xbf16> to vector<8x8xbf16>
    %28 = vector.extract_strided_slice %21 {offsets = [0, 0], sizes = [8, 8], strides = [1, 1]} : vector<8x32xbf16> to vector<8x8xbf16>
    %29 = vector.extract_strided_slice %24 {offsets = [0, 0], sizes = [8, 8], strides = [1, 1]} : vector<8x32xbf16> to vector<8x8xbf16>
    %cst_16 = arith.constant dense<0.000000e+00> : vector<8x8xf32>
    %30 = tpu.matmul %27, %28, %cst_16 {dimension_numbers = #tpu.dot_dimension_numbers<[1], [1], [0], [0], [0, 0, 1, 0], [], []>} : vector<8x8xbf16>, vector<8x8xbf16>, vector<8x8xf32> -> vector<8x8xf32>
    %31 = vector.broadcast %26 : vector<1x8xf32> to vector<8x8xf32>
    %32 = arith.addf %30, %31 : vector<8x8xf32>
    %cst_17 = arith.constant dense<0xFF800000> : vector<8xf32>
    %33 = vector.multi_reduction <maximumf>, %32, %cst_17 [1] : vector<8x8xf32> to vector<8xf32>
    %34 = vector.shape_cast %33 : vector<8xf32> to vector<8x1xf32>
    %35 = vector.broadcast %34 : vector<8x1xf32> to vector<8x8xf32>
    %36 = arith.subf %32, %35 : vector<8x8xf32>
    %37 = math.exp %36 : vector<8x8xf32>
    %cst_18 = arith.constant dense<0.000000e+00> : vector<8xf32>
    %38 = vector.multi_reduction <add>, %37, %cst_18 [1] : vector<8x8xf32> to vector<8xf32>
    %39 = vector.shape_cast %38 : vector<8xf32> to vector<8x1xf32>
    %40 = tpu.reciprocal %39 : vector<8x1xf32> -> vector<8x1xf32>
    %41 = vector.broadcast %40 : vector<8x1xf32> to vector<8x8xf32>
    %42 = arith.mulf %37, %41 : vector<8x8xf32>
    %43 = arith.truncf %42 : vector<8x8xf32> to vector<8x8xbf16>
    %cst_19 = arith.constant dense<0.000000e+00> : vector<8x8xf32>
    %44 = tpu.matmul %43, %29, %cst_19 {dimension_numbers = #tpu.dot_dimension_numbers<[1], [0], [0], [1], [0, 0, 1, 1], [], []>} : vector<8x8xbf16>, vector<8x8xbf16>, vector<8x8xf32> -> vector<8x8xf32>
    %45 = vector.extract_strided_slice %18 {offsets = [0, 8], sizes = [8, 8], strides = [1, 1]} : vector<8x32xbf16> to vector<8x8xbf16>
    %46 = vector.extract_strided_slice %21 {offsets = [0, 8], sizes = [8, 8], strides = [1, 1]} : vector<8x32xbf16> to vector<8x8xbf16>
    %47 = vector.extract_strided_slice %24 {offsets = [0, 8], sizes = [8, 8], strides = [1, 1]} : vector<8x32xbf16> to vector<8x8xbf16>
    %cst_20 = arith.constant dense<0.000000e+00> : vector<8x8xf32>
    %48 = tpu.matmul %45, %46, %cst_20 {dimension_numbers = #tpu.dot_dimension_numbers<[1], [1], [0], [0], [0, 0, 1, 0], [], []>} : vector<8x8xbf16>, vector<8x8xbf16>, vector<8x8xf32> -> vector<8x8xf32>
    %49 = vector.broadcast %26 : vector<1x8xf32> to vector<8x8xf32>
    %50 = arith.addf %48, %49 : vector<8x8xf32>
    %cst_21 = arith.constant dense<0xFF800000> : vector<8xf32>
    %51 = vector.multi_reduction <maximumf>, %50, %cst_21 [1] : vector<8x8xf32> to vector<8xf32>
    %52 = vector.shape_cast %51 : vector<8xf32> to vector<8x1xf32>
    %53 = vector.broadcast %52 : vector<8x1xf32> to vector<8x8xf32>
    %54 = arith.subf %50, %53 : vector<8x8xf32>
    %55 = math.exp %54 : vector<8x8xf32>
    %cst_22 = arith.constant dense<0.000000e+00> : vector<8xf32>
    %56 = vector.multi_reduction <add>, %55, %cst_22 [1] : vector<8x8xf32> to vector<8xf32>
    %57 = vector.shape_cast %56 : vector<8xf32> to vector<8x1xf32>
    %58 = tpu.reciprocal %57 : vector<8x1xf32> -> vector<8x1xf32>
    %59 = vector.broadcast %58 : vector<8x1xf32> to vector<8x8xf32>
    %60 = arith.mulf %55, %59 : vector<8x8xf32>
    %61 = arith.truncf %60 : vector<8x8xf32> to vector<8x8xbf16>
    %cst_23 = arith.constant dense<0.000000e+00> : vector<8x8xf32>
    %62 = tpu.matmul %61, %47, %cst_23 {dimension_numbers = #tpu.dot_dimension_numbers<[1], [0], [0], [1], [0, 0, 1, 1], [], []>} : vector<8x8xbf16>, vector<8x8xbf16>, vector<8x8xf32> -> vector<8x8xf32>
    %63 = vector.extract_strided_slice %18 {offsets = [0, 16], sizes = [8, 8], strides = [1, 1]} : vector<8x32xbf16> to vector<8x8xbf16>
    %64 = vector.extract_strided_slice %21 {offsets = [0, 16], sizes = [8, 8], strides = [1, 1]} : vector<8x32xbf16> to vector<8x8xbf16>
    %65 = vector.extract_strided_slice %24 {offsets = [0, 16], sizes = [8, 8], strides = [1, 1]} : vector<8x32xbf16> to vector<8x8xbf16>
    %cst_24 = arith.constant dense<0.000000e+00> : vector<8x8xf32>
    %66 = tpu.matmul %63, %64, %cst_24 {dimension_numbers = #tpu.dot_dimension_numbers<[1], [1], [0], [0], [0, 0, 1, 0], [], []>} : vector<8x8xbf16>, vector<8x8xbf16>, vector<8x8xf32> -> vector<8x8xf32>
    %67 = vector.broadcast %26 : vector<1x8xf32> to vector<8x8xf32>
    %68 = arith.addf %66, %67 : vector<8x8xf32>
    %cst_25 = arith.constant dense<0xFF800000> : vector<8xf32>
    %69 = vector.multi_reduction <maximumf>, %68, %cst_25 [1] : vector<8x8xf32> to vector<8xf32>
    %70 = vector.shape_cast %69 : vector<8xf32> to vector<8x1xf32>
    %71 = vector.broadcast %70 : vector<8x1xf32> to vector<8x8xf32>
    %72 = arith.subf %68, %71 : vector<8x8xf32>
    %73 = math.exp %72 : vector<8x8xf32>
    %cst_26 = arith.constant dense<0.000000e+00> : vector<8xf32>
    %74 = vector.multi_reduction <add>, %73, %cst_26 [1] : vector<8x8xf32> to vector<8xf32>
    %75 = vector.shape_cast %74 : vector<8xf32> to vector<8x1xf32>
    %76 = tpu.reciprocal %75 : vector<8x1xf32> -> vector<8x1xf32>
    %77 = vector.broadcast %76 : vector<8x1xf32> to vector<8x8xf32>
    %78 = arith.mulf %73, %77 : vector<8x8xf32>
    %79 = arith.truncf %78 : vector<8x8xf32> to vector<8x8xbf16>
    %cst_27 = arith.constant dense<0.000000e+00> : vector<8x8xf32>
    %80 = tpu.matmul %79, %65, %cst_27 {dimension_numbers = #tpu.dot_dimension_numbers<[1], [0], [0], [1], [0, 0, 1, 1], [], []>} : vector<8x8xbf16>, vector<8x8xbf16>, vector<8x8xf32> -> vector<8x8xf32>
    %81 = vector.extract_strided_slice %18 {offsets = [0, 24], sizes = [8, 8], strides = [1, 1]} : vector<8x32xbf16> to vector<8x8xbf16>
    %82 = vector.extract_strided_slice %21 {offsets = [0, 24], sizes = [8, 8], strides = [1, 1]} : vector<8x32xbf16> to vector<8x8xbf16>
    %83 = vector.extract_strided_slice %24 {offsets = [0, 24], sizes = [8, 8], strides = [1, 1]} : vector<8x32xbf16> to vector<8x8xbf16>
    %cst_28 = arith.constant dense<0.000000e+00> : vector<8x8xf32>
    %84 = tpu.matmul %81, %82, %cst_28 {dimension_numbers = #tpu.dot_dimension_numbers<[1], [1], [0], [0], [0, 0, 1, 0], [], []>} : vector<8x8xbf16>, vector<8x8xbf16>, vector<8x8xf32> -> vector<8x8xf32>
    %85 = vector.broadcast %26 : vector<1x8xf32> to vector<8x8xf32>
    %86 = arith.addf %84, %85 : vector<8x8xf32>
    %cst_29 = arith.constant dense<0xFF800000> : vector<8xf32>
    %87 = vector.multi_reduction <maximumf>, %86, %cst_29 [1] : vector<8x8xf32> to vector<8xf32>
    %88 = vector.shape_cast %87 : vector<8xf32> to vector<8x1xf32>
    %89 = vector.broadcast %88 : vector<8x1xf32> to vector<8x8xf32>
    %90 = arith.subf %86, %89 : vector<8x8xf32>
    %91 = math.exp %90 : vector<8x8xf32>
    %cst_30 = arith.constant dense<0.000000e+00> : vector<8xf32>
    %92 = vector.multi_reduction <add>, %91, %cst_30 [1] : vector<8x8xf32> to vector<8xf32>
    %93 = vector.shape_cast %92 : vector<8xf32> to vector<8x1xf32>
    %94 = tpu.reciprocal %93 : vector<8x1xf32> -> vector<8x1xf32>
    %95 = vector.broadcast %94 : vector<8x1xf32> to vector<8x8xf32>
    %96 = arith.mulf %91, %95 : vector<8x8xf32>
    %97 = arith.truncf %96 : vector<8x8xf32> to vector<8x8xbf16>
    %cst_31 = arith.constant dense<0.000000e+00> : vector<8x8xf32>
    %98 = tpu.matmul %97, %83, %cst_31 {dimension_numbers = #tpu.dot_dimension_numbers<[1], [0], [0], [1], [0, 0, 1, 1], [], []>} : vector<8x8xbf16>, vector<8x8xbf16>, vector<8x8xf32> -> vector<8x8xf32>
    %99 = tpu.concatenate %44, %62, %80, %98 in 1 : vector<8x8xf32>, vector<8x8xf32>, vector<8x8xf32>, vector<8x8xf32> -> vector<8x32xf32>
    %c0_32 = arith.constant 0 : index
    %c0_33 = arith.constant 0 : index
    %100 = vector.load %arg17[%c0_32, %c0_33] : memref<8x32xf32, #tpu.memory_space<vmem>>, vector<8x32xf32>
    %101 = arith.truncf %99 : vector<8x32xf32> to vector<8x32xbf16>
    %102 = arith.index_cast %arg2 : i32 to index
    %c0_34 = arith.constant 0 : index
    %c0_35 = arith.constant 0 : index
    %103 = vector.load %arg12[%102, %c0_34, %c0_35] : memref<1x32x32xbf16, #tpu.memory_space<vmem>>, vector<1x32x32xbf16>
    %104 = vector.shape_cast %103 : vector<1x32x32xbf16> to vector<32x32xbf16>
    %cst_36 = arith.constant dense<0.000000e+00> : vector<8x32xf32>
    %105 = tpu.matmul %101, %104, %cst_36 {dimension_numbers = #tpu.dot_dimension_numbers<[1], [0], [0], [1], [0, 0, 1, 1], [], []>} : vector<8x32xbf16>, vector<32x32xbf16>, vector<8x32xf32> -> vector<8x32xf32>
    %106 = arith.addf %100, %105 : vector<8x32xf32>
    %c0_37 = arith.constant 0 : index
    %c0_38 = arith.constant 0 : index
    %107 = vector.load %arg17[%c0_37, %c0_38] : memref<8x32xf32, #tpu.memory_space<vmem>>, vector<8x32xf32>
    tpu.vector_store %arg17[%c0_37, %c0_38], %106 {strides = array<i32>} : memref<8x32xf32, #tpu.memory_space<vmem>>, vector<8x32xf32>,
    %c0_i32_39 = arith.constant 0 : i32
    %108 = arith.cmpi eq, %arg2, %c0_i32_39 : i32
    %109 = arith.extui %108 : i1 to i32
    %c0_i32_40 = arith.constant 0 : i32
    %110 = arith.cmpi ne, %109, %c0_i32_40 : i32
    scf.if %110 {
      %c0_41 = arith.constant 0 : index
      %c0_42 = arith.constant 0 : index
      %111 = vector.load %arg17[%c0_41, %c0_42] : memref<8x32xf32, #tpu.memory_space<vmem>>, vector<8x32xf32>
      %c0_43 = arith.constant 0 : index
      %c0_44 = arith.constant 0 : index
      %112 = vector.load %arg13[%c0_43, %c0_44] : memref<1x32xf32, #tpu.memory_space<vmem>>, vector<1x32xf32>
      %113 = vector.broadcast %112 : vector<1x32xf32> to vector<8x32xf32>
      %114 = arith.addf %111, %113 : vector<8x32xf32>
      %c0_45 = arith.constant 0 : index
      %c0_46 = arith.constant 0 : index
      %c0_47 = arith.constant 0 : index
      %115 = vector.load %arg3[%c0_45, %c0_46, %c0_47] : memref<1x8x32xf32, #tpu.memory_space<vmem>>, vector<1x8x32xf32>
      %116 = vector.shape_cast %115 : vector<1x8x32xf32> to vector<8x32xf32>
      %117 = arith.addf %114, %116 : vector<8x32xf32>
      %cst_48 = arith.constant dense<0.000000e+00> : vector<8xf32>
      %118 = vector.multi_reduction <add>, %117, %cst_48 [1] : vector<8x32xf32> to vector<8xf32>
      %119 = vector.shape_cast %118 : vector<8xf32> to vector<8x1xf32>
      %cst_49 = arith.constant 3.200000e+01 : f32
      %120 = vector.broadcast %cst_49 : f32 to vector<8x1xf32>
      %121 = arith.divf %119, %120 : vector<8x1xf32>
      %122 = vector.broadcast %121 : vector<8x1xf32> to vector<8x32xf32>
      %123 = arith.subf %117, %122 : vector<8x32xf32>
      %124 = arith.mulf %123, %123 : vector<8x32xf32>
      %cst_50 = arith.constant dense<0.000000e+00> : vector<8xf32>
      %125 = vector.multi_reduction <add>, %124, %cst_50 [1] : vector<8x32xf32> to vector<8xf32>
      %126 = vector.shape_cast %125 : vector<8xf32> to vector<8x1xf32>
      %cst_51 = arith.constant 3.200000e+01 : f32
      %127 = vector.broadcast %cst_51 : f32 to vector<8x1xf32>
      %128 = arith.divf %126, %127 : vector<8x1xf32>
      %129 = vector.broadcast %121 : vector<8x1xf32> to vector<8x32xf32>
      %130 = arith.subf %117, %129 : vector<8x32xf32>
      %cst_52 = arith.constant 9.99999996E-13 : f32
      %131 = vector.broadcast %cst_52 : f32 to vector<8x1xf32>
      %132 = arith.addf %128, %131 : vector<8x1xf32>
      %133 = math.rsqrt %132 : vector<8x1xf32>
      %134 = vector.broadcast %133 : vector<8x1xf32> to vector<8x32xf32>
      %135 = arith.mulf %130, %134 : vector<8x32xf32>
      %c0_53 = arith.constant 0 : index
      %c0_54 = arith.constant 0 : index
      %136 = vector.load %arg14[%c0_53, %c0_54] : memref<1x32xf32, #tpu.memory_space<vmem>>, vector<1x32xf32>
      %137 = vector.broadcast %136 : vector<1x32xf32> to vector<8x32xf32>
      %138 = arith.mulf %137, %135 : vector<8x32xf32>
      %c0_55 = arith.constant 0 : index
      %c0_56 = arith.constant 0 : index
      %139 = vector.load %arg15[%c0_55, %c0_56] : memref<1x32xf32, #tpu.memory_space<vmem>>, vector<1x32xf32>
      %140 = vector.broadcast %139 : vector<1x32xf32> to vector<8x32xf32>
      %141 = arith.addf %138, %140 : vector<8x32xf32>
      %c0_57 = arith.constant 0 : index
      %c0_58 = arith.constant 0 : index
      %c0_59 = arith.constant 0 : index
      %142 = vector.load %arg16[%c0_57, %c0_58, %c0_59] : memref<1x8x32xf32, #tpu.memory_space<vmem>>, vector<1x8x32xf32>
      %143 = vector.shape_cast %142 : vector<1x8x32xf32> to vector<8x32xf32>
      %144 = vector.shape_cast %141 : vector<8x32xf32> to vector<1x8x32xf32>
      tpu.vector_store %arg16[%c0_57, %c0_58, %c0_59], %144 {strides = array<i32>} : memref<1x8x32xf32, #tpu.memory_space<vmem>>, vector<1x8x32xf32>,
    } else {
    }
    return
  }
  func.func @transform_0(%arg0: i32, %arg1: i32, %arg2: i32) -> (i32, i32, i32) {
    %c0_i32 = arith.constant 0 : i32
    %c0_i32_0 = arith.constant 0 : i32
    return %arg0, %arg1, %c0_i32 : i32, i32, i32
  }
  func.func @transform_1(%arg0: i32, %arg1: i32, %arg2: i32) -> (i32, i32, i32) {
    %c0_i32 = arith.constant 0 : i32
    %c0_i32_0 = arith.constant 0 : i32
    %c0_i32_1 = arith.constant 0 : i32
    return %arg0, %c0_i32, %c0_i32_0 : i32, i32, i32
  }
  func.func @transform_2(%arg0: i32, %arg1: i32, %arg2: i32) -> (i32, i32, i32) {
    %c0_i32 = arith.constant 0 : i32
    %c0_i32_0 = arith.constant 0 : i32
    %c0_i32_1 = arith.constant 0 : i32
    return %arg0, %c0_i32, %c0_i32_0 : i32, i32, i32
  }
  func.func @transform_3(%arg0: i32, %arg1: i32, %arg2: i32) -> (i32, i32, i32) {
    %c0_i32 = arith.constant 0 : i32
    %c0_i32_0 = arith.constant 0 : i32
    %c0_i32_1 = arith.constant 0 : i32
    %c0_i32_2 = arith.constant 0 : i32
    return %c0_i32, %c0_i32_0, %c0_i32_1 : i32, i32, i32
  }
  func.func @transform_4(%arg0: i32, %arg1: i32, %arg2: i32) -> (i32, i32, i32) {
    %c0_i32 = arith.constant 0 : i32
    %c0_i32_0 = arith.constant 0 : i32
    %c0_i32_1 = arith.constant 0 : i32
    %c0_i32_2 = arith.constant 0 : i32
    return %c0_i32, %c0_i32_0, %c0_i32_1 : i32, i32, i32
  }
  func.func @transform_5(%arg0: i32, %arg1: i32, %arg2: i32) -> (i32, i32, i32) {
    %c0_i32 = arith.constant 0 : i32
    %c0_i32_0 = arith.constant 0 : i32
    %c0_i32_1 = arith.constant 0 : i32
    %c0_i32_2 = arith.constant 0 : i32
    return %c0_i32, %c0_i32_0, %c0_i32_1 : i32, i32, i32
  }
  func.func @transform_6(%arg0: i32, %arg1: i32, %arg2: i32) -> (i32, i32, i32) {
    %c0_i32 = arith.constant 0 : i32
    %c0_i32_0 = arith.constant 0 : i32
    %c0_i32_1 = arith.constant 0 : i32
    %c0_i32_2 = arith.constant 0 : i32
    return %c0_i32, %c0_i32_0, %c0_i32_1 : i32, i32, i32
  }
  func.func @transform_7(%arg0: i32, %arg1: i32, %arg2: i32) -> (i32, i32, i32) {
    %c0_i32 = arith.constant 0 : i32
    %c0_i32_0 = arith.constant 0 : i32
    %c0_i32_1 = arith.constant 0 : i32
    %c0_i32_2 = arith.constant 0 : i32
    return %c0_i32, %c0_i32_0, %c0_i32_1 : i32, i32, i32
  }
  func.func @transform_8(%arg0: i32, %arg1: i32, %arg2: i32) -> (i32, i32, i32) {
    %c0_i32 = arith.constant 0 : i32
    %c0_i32_0 = arith.constant 0 : i32
    %c0_i32_1 = arith.constant 0 : i32
    %c0_i32_2 = arith.constant 0 : i32
    return %c0_i32, %c0_i32_0, %c0_i32_1 : i32, i32, i32
  }
  func.func @transform_9(%arg0: i32, %arg1: i32, %arg2: i32) -> (i32, i32, i32) {
    %c0_i32 = arith.constant 0 : i32
    %c0_i32_0 = arith.constant 0 : i32
    %c0_i32_1 = arith.constant 0 : i32
    %c0_i32_2 = arith.constant 0 : i32
    return %c0_i32, %c0_i32_0, %c0_i32_1 : i32, i32, i32
  }
  func.func @transform_10(%arg0: i32, %arg1: i32, %arg2: i32) -> (i32, i32) {
    %c0_i32 = arith.constant 0 : i32
    %c0_i32_0 = arith.constant 0 : i32
    %c0_i32_1 = arith.constant 0 : i32
    return %c0_i32, %c0_i32_0 : i32, i32
  }
  func.func @transform_11(%arg0: i32, %arg1: i32, %arg2: i32) -> (i32, i32) {
    %c0_i32 = arith.constant 0 : i32
    %c0_i32_0 = arith.constant 0 : i32
    %c0_i32_1 = arith.constant 0 : i32
    return %c0_i32, %c0_i32_0 : i32, i32
  }
  func.func @transform_12(%arg0: i32, %arg1: i32, %arg2: i32) -> (i32, i32) {
    %c0_i32 = arith.constant 0 : i32
    %c0_i32_0 = arith.constant 0 : i32
    %c0_i32_1 = arith.constant 0 : i32
    return %c0_i32, %c0_i32_0 : i32, i32
  }
  func.func @transform_13(%arg0: i32, %arg1: i32, %arg2: i32) -> (i32, i32, i32) {
    %c0_i32 = arith.constant 0 : i32
    %c0_i32_0 = arith.constant 0 : i32
    return %arg0, %arg1, %c0_i32 : i32, i32, i32
  }
}

</mosaic_0001>

<llo_original>
// kernel: tpu_custom_call.1
$region0: #{tpu_custom_call.1}
  #allocation0 [shape = 'u32[]', space=smem, size = 0x4, offset = 0x4, fixed_abs, tag = 'smem constant byte address 0x4 - core index']
  #allocation1 [shape = 'u32[144,128]{1,0:T(1,128)}', space=vmem, size = 0x12000, scoped, tag = 'internal scratch']
  #allocation2 [shape = 'f32[8,32]{1,0:T(8,128)}', space=vmem, size = 0x1000, scoped, tag = 'scratch operand']
  #allocation3 [shape = 'bf16[1,8,32]{2,1,0:T(8,128)(2,1)}', space=vmem, size = 0x800, scoped, tag = 'scratch operand']
  #allocation4 [shape = 'bf16[1,8,32]{2,1,0:T(8,128)(2,1)}', space=vmem, size = 0x800, scoped, tag = 'scratch operand']
  %s0 = inlined_call_operand.hbm [shape: f32[2,8,32], index: 0, kind: input, shape index: {}]
  %s1 = inlined_call_operand.hbm [shape: f32[2,8,32], index: 1, kind: input, shape index: {}]
  %s2 = inlined_call_operand.vmem [shape: f32[2,1,8], index: 2, kind: input, shape index: {}]
  %s3 = inlined_call_operand.hbm [shape: bf16[1,32,32], index: 3, kind: input, shape index: {}]
  %s4 = inlined_call_operand.hbm [shape: f32[1,1,32], index: 4, kind: input, shape index: {}]
  %s5 = inlined_call_operand.vmem [shape: bf16[1,32,32], index: 5, kind: input, shape index: {}]
  %s6 = inlined_call_operand.hbm [shape: f32[1,1,32], index: 6, kind: input, shape index: {}]
  %s7 = inlined_call_operand.hbm [shape: bf16[1,32,32], index: 7, kind: input, shape index: {}]
  %s8 = inlined_call_operand.hbm [shape: f32[1,1,32], index: 8, kind: input, shape index: {}]
  %s9 = inlined_call_operand.vmem [shape: bf16[1,32,32], index: 9, kind: input, shape index: {}]
  %s10 = inlined_call_operand.vmem [shape: f32[1,32], index: 10, kind: input, shape index: {}]
  %s11 = inlined_call_operand.vmem [shape: f32[1,32], index: 11, kind: input, shape index: {}]
  %s12 = inlined_call_operand.vmem [shape: f32[1,32], index: 12, kind: input, shape index: {}]
  %s13 = inlined_call_operand.hbm [shape: f32[2,8,32], index: 13, kind: output, shape index: {}]
  %s14 = sld [smem:[#allocation0]]
  $region125: #{tpu_custom_call.1} parent=0
    _
  %s16 = ssub.s32 1, %s14
  %s17 = scalar_select 0, %s16, %s14
  $region1: #{tpu_custom_call.1} parent=0
    #allocation5 [shape = 'u8[8192]{0}', space=vmem, size = 0x2000, scoped, tag = 'input window, operand 0']
    #allocation6 [shape = 's32[2]{0}', space=sflag, size = 0x8, scoped, tag = 'scoped memory for tpu_custom_call.1']
    #allocation7 [shape = 's32[2]{0}', space=sflag, size = 0x8, scoped, tag = 'scoped memory for tpu_custom_call.1']
    #allocation8 [shape = 'u8[8192]{0}', space=vmem, size = 0x2000, scoped, tag = 'input window, operand 1']
    #allocation9 [shape = 's32[2]{0}', space=sflag, size = 0x8, scoped, tag = 'scoped memory for tpu_custom_call.1']
    #allocation10 [shape = 'u8[8192]{0}', space=vmem, size = 0x2000, scoped, tag = 'input window, operand 3, single buffered']
    #allocation11 [shape = 'u8[512]{0}', space=vmem, size = 0x400, scoped, tag = 'input window, operand 4, single buffered']
    #allocation12 [shape = 's32[1]{0}', space=sflag, size = 0x4, scoped, tag = 'scoped memory for tpu_custom_call.1']
    #allocation13 [shape = 'u8[512]{0}', space=vmem, size = 0x400, scoped, tag = 'input window, operand 6, single buffered']
    #allocation14 [shape = 'u8[8192]{0}', space=vmem, size = 0x2000, scoped, tag = 'input window, operand 7, single buffered']
    #allocation15 [shape = 's32[1]{0}', space=sflag, size = 0x4, scoped, tag = 'scoped memory for tpu_custom_call.1']
    #allocation16 [shape = 'u8[512]{0}', space=vmem, size = 0x400, scoped, tag = 'input window, operand 8, single buffered']
    #allocation17 [shape = 'u8[8192]{0}', space=vmem, size = 0x2000, scoped, tag = 'output window, operand 0']
    %18 = vsyncpa [#allocation6], 0
    %s19 = scalar_lea.sflag [#allocation6], 1
    %20 = vsyncpa %s19, 0
    %21 = vsyncpa [#allocation9], 0
    %s22 = scalar_lea.sflag [#allocation9], 1
    %23 = vsyncpa %s22, 0
    %24 = vsyncpa [#allocation12], 0
    %25 = vsyncpa [#allocation15], 0
    %26 = vsyncpa [#allocation7], 0
    %s27 = scalar_lea.sflag [#allocation7], 1
    %28 = vsyncpa %s27, 0
    loop: start=0, step=1, limit=4
    $region2: #{tpu_custom_call.1} parent=1 // loop_pre_header
      _
    $region3: #{tpu_custom_call.1} parent=1 // loop_header
      %s30 = sphi 0, %s34
      %p31 = scmp.ge.s32.totalorder %s30, 4
      %s37 = sphi 0, %s56
      %s38 = sphi 0, %s52
      %s39 = sphi 0, %s48
      %s40 = sphi 0, %s37
      %s41 = sphi 0, %s38
      %s42 = sphi 0, %s39
      %s43 = sphi 0, %s40
      %s44 = sphi 0, %s41
      %s45 = sphi 0, %s42
      %s61 = sphi 0, %s63
      %s64 = sphi 0, %s61
      %s65 = sphi 0, %s64
      %s81 = sphi 0, %s65
      %s87 = sphi 0, %s89
      %s90 = sphi 0, %s87
      %s91 = sphi 0, %s90
      %s107 = sphi 0, %s91
      %s113 = sphi 0, %s115
      %s116 = sphi 0, %s113
      %s117 = sphi 0, %s116
      %s133 = sphi 0, %s117
      %s137 = sphi 0, %s137
      %s139 = sphi 0, %s137
      %s140 = sphi 0, %s139
      %s154 = sphi 0, %s140
      %s158 = sphi 0, %s158
      %s160 = sphi 0, %s158
      %s161 = sphi 0, %s160
      %s175 = sphi 0, %s161
      %s179 = sphi 0, %s179
      %s181 = sphi 0, %s179
      %s182 = sphi 0, %s181
      %s196 = sphi 0, %s182
      %s200 = sphi 0, %s200
      %s202 = sphi 0, %s200
      %s203 = sphi 0, %s202
      %s217 = sphi 0, %s203
      %s221 = sphi 0, %s221
      %s223 = sphi 0, %s221
      %s224 = sphi 0, %s223
      %s238 = sphi 0, %s224
      %s242 = sphi 0, %s242
      %s244 = sphi 0, %s242
      %s245 = sphi 0, %s244
      %s259 = sphi 0, %s245
      %s263 = sphi 0, %s263
      %s265 = sphi 0, %s263
      %s266 = sphi 0, %s265
      %s280 = sphi 0, %s266
      %s284 = sphi 0, %s284
      %s286 = sphi 0, %s284
      %s287 = sphi 0, %s286
      %s301 = sphi 0, %s287
      %s305 = sphi 0, %s305
      %s307 = sphi 0, %s305
      %s308 = sphi 0, %s307
      %s322 = sphi 0, %s308
      %s326 = sphi 0, %s326
      %s328 = sphi 0, %s326
      %s329 = sphi 0, %s328
      %s343 = sphi 0, %s329
      %s351 = sphi 0, %s353
      %s354 = sphi 0, %s351
      %s355 = sphi 0, %s354
      %s371 = sphi 0, %s355
    $region4: #{tpu_custom_call.1} parent=1 // loop_header_branch
      %33 = sbr.rel (%p31) target = $region8
    $region5: #{tpu_custom_call.1} parent=1 // loop_body
      %s35 = ssub.s32 %s30, 1
      %s36 = ssub.s32 %s30, 2
      %s46 = sadd.s32 1, %s39
      %p47 = scmp.ge.s32.totalorder %s46, 1
      %s48 = scalar_select %p47, 0, %s46
      %s49 = sadd.s32 1, %s38
      %s50 = scalar_select %p47, %s49, %s38
      %p51 = scmp.ge.s32.totalorder %s50, 1
      %s52 = scalar_select %p51, 0, %s50
      %s53 = sadd.s32 1, %s37
      %s54 = scalar_select %p51, %s53, %s37
      %p55 = scmp.ge.s32.totalorder %s54, 2
      %s56 = scalar_select %p55, 0, %s54
      %s57 = ssub.s32 %s37, %s56
      %s58 = ssub.s32 %s38, %s52
      %s59 = sor.u32 %s57, %s58
      %p60 = scmp.eq.s32.totalorder %s59, 0
      %s62 = sadd.s32 %s61, 1
      %s63 = scalar_select %p60, %s61, %s62
      %p66 = pneg %p60
      %p67 = scmp.eq.s32.totalorder %s30, 1
      %p68 = por %p66, %p67
      %p69 = scmp.ne.s32.totalorder %s61, %s64
      %p70 = scmp.eq.s32.totalorder %s30, 0
      %p71 = por %p69, %p70
      %p72 = scmp.ne.s32.totalorder %s61, %s64
      %p73 = scmp.eq.s32.totalorder %s35, 1
      %p74 = por %p72, %p73
      %p75 = scmp.ne.s32.totalorder %s64, %s65
      %p76 = scmp.eq.s32.totalorder %s35, 0
      %p77 = por %p75, %p76
      %p78 = scmp.ne.s32.totalorder %s64, %s65
      %p79 = scmp.eq.s32.totalorder %s36, 1
      %p80 = por %p78, %p79
      %p82 = scmp.ne.s32.totalorder %s65, %s81
      %p83 = scmp.eq.s32.totalorder %s36, 0
      %p84 = por %p82, %p83
      %s85 = ssub.s32 %s37, %s56
      %p86 = scmp.eq.s32.totalorder %s85, 0
      %s88 = sadd.s32 %s87, 1
      %s89 = scalar_select %p86, %s87, %s88
      %p92 = pneg %p86
      %p93 = scmp.eq.s32.totalorder %s30, 1
      %p94 = por %p92, %p93
      %p95 = scmp.ne.s32.totalorder %s87, %s90
      %p96 = scmp.eq.s32.totalorder %s30, 0
      %p97 = por %p95, %p96
      %p98 = scmp.ne.s32.totalorder %s87, %s90
      %p99 = scmp.eq.s32.totalorder %s35, 1
      %p100 = por %p98, %p99
      %p101 = scmp.ne.s32.totalorder %s90, %s91
      %p102 = scmp.eq.s32.totalorder %s35, 0
      %p103 = por %p101, %p102
      %p104 = scmp.ne.s32.totalorder %s90, %s91
      %p105 = scmp.eq.s32.totalorder %s36, 1
      %p106 = por %p104, %p105
      %p108 = scmp.ne.s32.totalorder %s91, %s107
      %p109 = scmp.eq.s32.totalorder %s36, 0
      %p110 = por %p108, %p109
      %s111 = ssub.s32 %s37, %s56
      %p112 = scmp.eq.s32.totalorder %s111, 0
      %s114 = sadd.s32 %s113, 1
      %s115 = scalar_select %p112, %s113, %s114
      %p118 = pneg %p112
      %p119 = scmp.eq.s32.totalorder %s30, 1
      %p120 = por %p118, %p119
      %p121 = scmp.ne.s32.totalorder %s113, %s116
      %p122 = scmp.eq.s32.totalorder %s30, 0
      %p123 = por %p121, %p122
      %p124 = scmp.ne.s32.totalorder %s113, %s116
      %p125 = scmp.eq.s32.totalorder %s35, 1
      %p126 = por %p124, %p125
      %p127 = scmp.ne.s32.totalorder %s116, %s117
      %p128 = scmp.eq.s32.totalorder %s35, 0
      %p129 = por %p127, %p128
      %p130 = scmp.ne.s32.totalorder %s116, %s117
      %p131 = scmp.eq.s32.totalorder %s36, 1
      %p132 = por %p130, %p131
      %p134 = scmp.ne.s32.totalorder %s117, %s133
      %p135 = scmp.eq.s32.totalorder %s36, 0
      %p136 = por %p134, %p135
      %s138 = sadd.s32 %s137, 1
      %p141 = scmp.eq.s32.totalorder %s30, 1
      %p142 = scmp.ne.s32.totalorder %s137, %s139
      %p143 = scmp.eq.s32.totalorder %s30, 0
      %p144 = por %p142, %p143
      %p145 = scmp.ne.s32.totalorder %s137, %s139
      %p146 = scmp.eq.s32.totalorder %s35, 1
      %p147 = por %p145, %p146
      %p148 = scmp.ne.s32.totalorder %s139, %s140
      %p149 = scmp.eq.s32.totalorder %s35, 0
      %p150 = por %p148, %p149
      %p151 = scmp.ne.s32.totalorder %s139, %s140
      %p152 = scmp.eq.s32.totalorder %s36, 1
      %p153 = por %p151, %p152
      %p155 = scmp.ne.s32.totalorder %s140, %s154
      %p156 = scmp.eq.s32.totalorder %s36, 0
      %p157 = por %p155, %p156
      %s159 = sadd.s32 %s158, 1
      %p162 = scmp.eq.s32.totalorder %s30, 1
      %p163 = scmp.ne.s32.totalorder %s158, %s160
      %p164 = scmp.eq.s32.totalorder %s30, 0
      %p165 = por %p163, %p164
      %p166 = scmp.ne.s32.totalorder %s158, %s160
      %p167 = scmp.eq.s32.totalorder %s35, 1
      %p168 = por %p166, %p167
      %p169 = scmp.ne.s32.totalorder %s160, %s161
      %p170 = scmp.eq.s32.totalorder %s35, 0
      %p171 = por %p169, %p170
      %p172 = scmp.ne.s32.totalorder %s160, %s161
      %p173 = scmp.eq.s32.totalorder %s36, 1
      %p174 = por %p172, %p173
      %p176 = scmp.ne.s32.totalorder %s161, %s175
      %p177 = scmp.eq.s32.totalorder %s36, 0
      %p178 = por %p176, %p177
      %s180 = sadd.s32 %s179, 1
      %p183 = scmp.eq.s32.totalorder %s30, 1
      %p184 = scmp.ne.s32.totalorder %s179, %s181
      %p185 = scmp.eq.s32.totalorder %s30, 0
      %p186 = por %p184, %p185
      %p187 = scmp.ne.s32.totalorder %s179, %s181
      %p188 = scmp.eq.s32.totalorder %s35, 1
      %p189 = por %p187, %p188
      %p190 = scmp.ne.s32.totalorder %s181, %s182
      %p191 = scmp.eq.s32.totalorder %s35, 0
      %p192 = por %p190, %p191
      %p193 = scmp.ne.s32.totalorder %s181, %s182
      %p194 = scmp.eq.s32.totalorder %s36, 1
      %p195 = por %p193, %p194
      %p197 = scmp.ne.s32.totalorder %s182, %s196
      %p198 = scmp.eq.s32.totalorder %s36, 0
      %p199 = por %p197, %p198
      %s201 = sadd.s32 %s200, 1
      %p204 = scmp.eq.s32.totalorder %s30, 1
      %p205 = scmp.ne.s32.totalorder %s200, %s202
      %p206 = scmp.eq.s32.totalorder %s30, 0
      %p207 = por %p205, %p206
      %p208 = scmp.ne.s32.totalorder %s200, %s202
      %p209 = scmp.eq.s32.totalorder %s35, 1
      %p210 = por %p208, %p209
      %p211 = scmp.ne.s32.totalorder %s202, %s203
      %p212 = scmp.eq.s32.totalorder %s35, 0
      %p213 = por %p211, %p212
      %p214 = scmp.ne.s32.totalorder %s202, %s203
      %p215 = scmp.eq.s32.totalorder %s36, 1
      %p216 = por %p214, %p215
      %p218 = scmp.ne.s32.totalorder %s203, %s217
      %p219 = scmp.eq.s32.totalorder %s36, 0
      %p220 = por %p218, %p219
      %s222 = sadd.s32 %s221, 1
      %p225 = scmp.eq.s32.totalorder %s30, 1
      %p226 = scmp.ne.s32.totalorder %s221, %s223
      %p227 = scmp.eq.s32.totalorder %s30, 0
      %p228 = por %p226, %p227
      %p229 = scmp.ne.s32.totalorder %s221, %s223
      %p230 = scmp.eq.s32.totalorder %s35, 1
      %p231 = por %p229, %p230
      %p232 = scmp.ne.s32.totalorder %s223, %s224
      %p233 = scmp.eq.s32.totalorder %s35, 0
      %p234 = por %p232, %p233
      %p235 = scmp.ne.s32.totalorder %s223, %s224
      %p236 = scmp.eq.s32.totalorder %s36, 1
      %p237 = por %p235, %p236
      %p239 = scmp.ne.s32.totalorder %s224, %s238
      %p240 = scmp.eq.s32.totalorder %s36, 0
      %p241 = por %p239, %p240
      %s243 = sadd.s32 %s242, 1
      %p246 = scmp.eq.s32.totalorder %s30, 1
      %p247 = scmp.ne.s32.totalorder %s242, %s244
      %p248 = scmp.eq.s32.totalorder %s30, 0
      %p249 = por %p247, %p248
      %p250 = scmp.ne.s32.totalorder %s242, %s244
      %p251 = scmp.eq.s32.totalorder %s35, 1
      %p252 = por %p250, %p251
      %p253 = scmp.ne.s32.totalorder %s244, %s245
      %p254 = scmp.eq.s32.totalorder %s35, 0
      %p255 = por %p253, %p254
      %p256 = scmp.ne.s32.totalorder %s244, %s245
      %p257 = scmp.eq.s32.totalorder %s36, 1
      %p258 = por %p256, %p257
      %p260 = scmp.ne.s32.totalorder %s245, %s259
      %p261 = scmp.eq.s32.totalorder %s36, 0
      %p262 = por %p260, %p261
      %s264 = sadd.s32 %s263, 1
      %p267 = scmp.eq.s32.totalorder %s30, 1
      %p268 = scmp.ne.s32.totalorder %s263, %s265
      %p269 = scmp.eq.s32.totalorder %s30, 0
      %p270 = por %p268, %p269
      %p271 = scmp.ne.s32.totalorder %s263, %s265
      %p272 = scmp.eq.s32.totalorder %s35, 1
      %p273 = por %p271, %p272
      %p274 = scmp.ne.s32.totalorder %s265, %s266
      %p275 = scmp.eq.s32.totalorder %s35, 0
      %p276 = por %p274, %p275
      %p277 = scmp.ne.s32.totalorder %s265, %s266
      %p278 = scmp.eq.s32.totalorder %s36, 1
      %p279 = por %p277, %p278
      %p281 = scmp.ne.s32.totalorder %s266, %s280
      %p282 = scmp.eq.s32.totalorder %s36, 0
      %p283 = por %p281, %p282
      %s285 = sadd.s32 %s284, 1
      %p288 = scmp.eq.s32.totalorder %s30, 1
      %p289 = scmp.ne.s32.totalorder %s284, %s286
      %p290 = scmp.eq.s32.totalorder %s30, 0
      %p291 = por %p289, %p290
      %p292 = scmp.ne.s32.totalorder %s284, %s286
      %p293 = scmp.eq.s32.totalorder %s35, 1
      %p294 = por %p292, %p293
      %p295 = scmp.ne.s32.totalorder %s286, %s287
      %p296 = scmp.eq.s32.totalorder %s35, 0
      %p297 = por %p295, %p296
      %p298 = scmp.ne.s32.totalorder %s286, %s287
      %p299 = scmp.eq.s32.totalorder %s36, 1
      %p300 = por %p298, %p299
      %p302 = scmp.ne.s32.totalorder %s287, %s301
      %p303 = scmp.eq.s32.totalorder %s36, 0
      %p304 = por %p302, %p303
      %s306 = sadd.s32 %s305, 1
      %p309 = scmp.eq.s32.totalorder %s30, 1
      %p310 = scmp.ne.s32.totalorder %s305, %s307
      %p311 = scmp.eq.s32.totalorder %s30, 0
      %p312 = por %p310, %p311
      %p313 = scmp.ne.s32.totalorder %s305, %s307
      %p314 = scmp.eq.s32.totalorder %s35, 1
      %p315 = por %p313, %p314
      %p316 = scmp.ne.s32.totalorder %s307, %s308
      %p317 = scmp.eq.s32.totalorder %s35, 0
      %p318 = por %p316, %p317
      %p319 = scmp.ne.s32.totalorder %s307, %s308
      %p320 = scmp.eq.s32.totalorder %s36, 1
      %p321 = por %p319, %p320
      %p323 = scmp.ne.s32.totalorder %s308, %s322
      %p324 = scmp.eq.s32.totalorder %s36, 0
      %p325 = por %p323, %p324
      %s327 = sadd.s32 %s326, 1
      %p330 = scmp.eq.s32.totalorder %s30, 1
      %p331 = scmp.ne.s32.totalorder %s326, %s328
      %p332 = scmp.eq.s32.totalorder %s30, 0
      %p333 = por %p331, %p332
      %p334 = scmp.ne.s32.totalorder %s326, %s328
      %p335 = scmp.eq.s32.totalorder %s35, 1
      %p336 = por %p334, %p335
      %p337 = scmp.ne.s32.totalorder %s328, %s329
      %p338 = scmp.eq.s32.totalorder %s35, 0
      %p339 = por %p337, %p338
      %p340 = scmp.ne.s32.totalorder %s328, %s329
      %p341 = scmp.eq.s32.totalorder %s36, 1
      %p342 = por %p340, %p341
      %p344 = scmp.ne.s32.totalorder %s329, %s343
      %p345 = scmp.eq.s32.totalorder %s36, 0
      %p346 = por %p344, %p345
      %s347 = ssub.s32 %s37, %s56
      %s348 = ssub.s32 %s38, %s52
      %s349 = sor.u32 %s347, %s348
      %p350 = scmp.eq.s32.totalorder %s349, 0
      %s352 = sadd.s32 %s351, 1
      %s353 = scalar_select %p350, %s351, %s352
      %p356 = pneg %p350
      %p357 = scmp.eq.s32.totalorder %s30, 1
      %p358 = por %p356, %p357
      %p359 = scmp.ne.s32.totalorder %s351, %s354
      %p360 = scmp.eq.s32.totalorder %s30, 0
      %p361 = por %p359, %p360
      %p362 = scmp.ne.s32.totalorder %s351, %s354
      %p363 = scmp.eq.s32.totalorder %s35, 1
      %p364 = por %p362, %p363
      %p365 = scmp.ne.s32.totalorder %s354, %s355
      %p366 = scmp.eq.s32.totalorder %s35, 0
      %p367 = por %p365, %p366
      %p368 = scmp.ne.s32.totalorder %s354, %s355
      %p369 = scmp.eq.s32.totalorder %s36, 1
      %p370 = por %p368, %p369
      %p372 = scmp.ne.s32.totalorder %s355, %s371
      %p373 = scmp.eq.s32.totalorder %s36, 0
      %p374 = por %p372, %p373
      %p375 = scmp.le.s32.totalorder 1, %s30
      %p376 = scmp.lt.s32.totalorder %s30, 3
      %p377 = pnand %p375, %p376
      %p378 = pneg %p377
      // Predicated region
      $region9: #{tpu_custom_call.1} parent=5 // pred_check
        _
      $region10: #{tpu_custom_call.1} parent=5 // pred_check_branch
        %380 = sbr.rel (%p377) target = $region12
      $region11: #{tpu_custom_call.1} parent=5 // pred_region
        %s381 = ssub.s32 %s30, 1
        // Predicated region
        $region13: #{tpu_custom_call.1} parent=11 // pred_check
          %p382 = pneg %p150
        $region14: #{tpu_custom_call.1} parent=11 // pred_check_branch
          %384 = sbr.rel (%p382) target = $region16
        $region15: #{tpu_custom_call.1} parent=11 // pred_region
          %s386 = ssub.s32 256, 256
          %387 = vsyncadd [#allocation9], %s386
          %s388 = sshll.u32 [#allocation10], 4
          %s389 = int_to_ptr.vmem [resolvable:$true] %s388
          %394 = dma.hbm_to_vmem [thread:$0]  %s3, 256, %s389, [#allocation9], 64, 64, 4
        $region16: #{tpu_custom_call.1} parent=11 // pred_fallthru
          _
        // Predicated region
        $region17: #{tpu_custom_call.1} parent=11 // pred_check
          %p395 = pneg %p171
        $region18: #{tpu_custom_call.1} parent=11 // pred_check_branch
          %397 = sbr.rel (%p395) target = $region20
        $region19: #{tpu_custom_call.1} parent=11 // pred_region
          %s399 = ssub.s32 16, 16
          %400 = vsyncadd [#allocation12], %s399
          %s402 = sshll.u32 [#allocation11], 4
          %s403 = int_to_ptr.vmem [resolvable:$true] %s402
          %405 = dma.hbm_to_vmem [thread:$0]  %s4, 16, %s403, [#allocation12]
        $region20: #{tpu_custom_call.1} parent=11 // pred_fallthru
          _
        // Predicated region
        $region21: #{tpu_custom_call.1} parent=11 // pred_check
          %p406 = pneg %p192
        $region22: #{tpu_custom_call.1} parent=11 // pred_check_branch
          %408 = sbr.rel (%p406) target = $region24
        $region23: #{tpu_custom_call.1} parent=11 // pred_region
          _
        $region24: #{tpu_custom_call.1} parent=11 // pred_fallthru
          _
        // Predicated region
        $region25: #{tpu_custom_call.1} parent=11 // pred_check
          %p409 = pneg %p213
        $region26: #{tpu_custom_call.1} parent=11 // pred_check_branch
          %411 = sbr.rel (%p409) target = $region28
        $region27: #{tpu_custom_call.1} parent=11 // pred_region
          %s413 = ssub.s32 16, 16
          %414 = vsyncadd [#allocation12], %s413
          %s416 = sshll.u32 [#allocation13], 4
          %s417 = int_to_ptr.vmem [resolvable:$true] %s416
          %419 = dma.hbm_to_vmem [thread:$0]  %s6, 16, %s417, [#allocation12]
        $region28: #{tpu_custom_call.1} parent=11 // pred_fallthru
          _
        // Predicated region
        $region29: #{tpu_custom_call.1} parent=11 // pred_check
          %p420 = pneg %p234
        $region30: #{tpu_custom_call.1} parent=11 // pred_check_branch
          %422 = sbr.rel (%p420) target = $region32
        $region31: #{tpu_custom_call.1} parent=11 // pred_region
          %s424 = ssub.s32 256, 256
          %425 = vsyncadd [#allocation15], %s424
          %s426 = sshll.u32 [#allocation14], 4
          %s427 = int_to_ptr.vmem [resolvable:$true] %s426
          %432 = dma.hbm_to_vmem [thread:$0]  %s7, 256, %s427, [#allocation15], 64, 64, 4
        $region32: #{tpu_custom_call.1} parent=11 // pred_fallthru
          _
        // Predicated region
        $region33: #{tpu_custom_call.1} parent=11 // pred_check
          %p433 = pneg %p255
        $region34: #{tpu_custom_call.1} parent=11 // pred_check_branch
          %435 = sbr.rel (%p433) target = $region36
        $region35: #{tpu_custom_call.1} parent=11 // pred_region
          %s437 = ssub.s32 16, 16
          %438 = vsyncadd [#allocation15], %s437
          %s440 = sshll.u32 [#allocation16], 4
          %s441 = int_to_ptr.vmem [resolvable:$true] %s440
          %443 = dma.hbm_to_vmem [thread:$0]  %s8, 16, %s441, [#allocation15]
        $region36: #{tpu_custom_call.1} parent=11 // pred_fallthru
          _
        // Predicated region
        $region37: #{tpu_custom_call.1} parent=11 // pred_check
          %p444 = pneg %p276
        $region38: #{tpu_custom_call.1} parent=11 // pred_check_branch
          %446 = sbr.rel (%p444) target = $region40
        $region39: #{tpu_custom_call.1} parent=11 // pred_region
          _
        $region40: #{tpu_custom_call.1} parent=11 // pred_fallthru
          _
        // Predicated region
        $region41: #{tpu_custom_call.1} parent=11 // pred_check
          %p447 = pneg %p297
        $region42: #{tpu_custom_call.1} parent=11 // pred_check_branch
          %449 = sbr.rel (%p447) target = $region44
        $region43: #{tpu_custom_call.1} parent=11 // pred_region
          _
        $region44: #{tpu_custom_call.1} parent=11 // pred_fallthru
          _
        // Predicated region
        $region45: #{tpu_custom_call.1} parent=11 // pred_check
          %p450 = pneg %p318
        $region46: #{tpu_custom_call.1} parent=11 // pred_check_branch
          %452 = sbr.rel (%p450) target = $region48
        $region47: #{tpu_custom_call.1} parent=11 // pred_region
          _
        $region48: #{tpu_custom_call.1} parent=11 // pred_fallthru
          _
        // Predicated region
        $region49: #{tpu_custom_call.1} parent=11 // pred_check
          %p453 = pneg %p339
        $region50: #{tpu_custom_call.1} parent=11 // pred_check_branch
          %455 = sbr.rel (%p453) target = $region52
        $region51: #{tpu_custom_call.1} parent=11 // pred_region
          _
        $region52: #{tpu_custom_call.1} parent=11 // pred_fallthru
          _
      $region12: #{tpu_custom_call.1} parent=5 // pred_fallthru
        _
      %p456 = scmp.lt.s32.totalorder %s30, 2
      // Predicated region
      $region53: #{tpu_custom_call.1} parent=5 // pred_check
        %p457 = pneg %p456
      $region54: #{tpu_custom_call.1} parent=5 // pred_check_branch
        %459 = sbr.rel (%p457) target = $region56
      $region55: #{tpu_custom_call.1} parent=5 // pred_region
        // Predicated region
        $region57: #{tpu_custom_call.1} parent=55 // pred_check
          %p460 = pneg %p71
        $region58: #{tpu_custom_call.1} parent=55 // pred_check_branch
          %462 = sbr.rel (%p460) target = $region60
        $region59: #{tpu_custom_call.1} parent=55 // pred_region
          %s463 = sand.u32 %s61, 1
          %s464 = scalar_lea.sflag [#allocation6], %s463
          %s465 = sand.u32 %s61, 1
          %s466 = smul.addr %s465, 8
          %s467 = scalar_lea.vmem [#allocation5], %s466
          %s469 = ssub.s32 128, 128
          %470 = vsyncadd %s464, %s469
          %s471 = sadd.s32 %s38, %s37
          %s472 = smul.addr %s471, 128
          %s473 = scalar_lea.hbm %s0, %s472
          %s475 = sshll.u32 %s467, 4
          %s476 = int_to_ptr.vmem [resolvable:$true] %s475
          %478 = dma.hbm_to_vmem [thread:$0]  %s473, 128, %s476, %s464
        $region60: #{tpu_custom_call.1} parent=55 // pred_fallthru
          _
        // Predicated region
        $region61: #{tpu_custom_call.1} parent=55 // pred_check
          %p479 = pneg %p97
        $region62: #{tpu_custom_call.1} parent=55 // pred_check_branch
          %481 = sbr.rel (%p479) target = $region64
        $region63: #{tpu_custom_call.1} parent=55 // pred_region
          %s482 = sand.u32 %s30, 1
          %s483 = scalar_lea.sflag [#allocation9], %s482
          %s484 = sand.u32 %s87, 1
          %s485 = smul.addr %s484, 8
          %s486 = scalar_lea.vmem [#allocation8], %s485
          %s488 = ssub.s32 128, 128
          %489 = vsyncadd %s483, %s488
          %s490 = smul.addr %s37, 128
          %s491 = scalar_lea.hbm %s1, %s490
          %s493 = sshll.u32 %s486, 4
          %s494 = int_to_ptr.vmem [resolvable:$true] %s493
          %496 = dma.hbm_to_vmem [thread:$0]  %s491, 128, %s494, %s483
        $region64: #{tpu_custom_call.1} parent=55 // pred_fallthru
          _
        // Predicated region
        $region65: #{tpu_custom_call.1} parent=55 // pred_check
          %p497 = pneg %p123
        $region66: #{tpu_custom_call.1} parent=55 // pred_check_branch
          %499 = sbr.rel (%p497) target = $region68
        $region67: #{tpu_custom_call.1} parent=55 // pred_region
          %p500 = scmp.lt.s32.totalorder %s37, 1
          %s501 = scalar_select %p500, %s37, 1
          %s502 = scalar_lea.vmem %s2, %s501
        $region68: #{tpu_custom_call.1} parent=55 // pred_fallthru
          _
      $region56: #{tpu_custom_call.1} parent=5 // pred_fallthru
        _
      %p503 = scmp.le.s32.totalorder 1, %s30
      %p504 = scmp.lt.s32.totalorder %s30, 3
      %p505 = pnand %p503, %p504
      %p506 = pneg %p505
      // Predicated region
      $region69: #{tpu_custom_call.1} parent=5 // pred_check
        _
      $region70: #{tpu_custom_call.1} parent=5 // pred_check_branch
        %508 = sbr.rel (%p505) target = $region72
      $region71: #{tpu_custom_call.1} parent=5 // pred_region
        %s509 = ssub.s32 %s30, 1
        %s510 = sand.u32 %s64, 1
        %s511 = scalar_lea.sflag [#allocation6], %s510
        %s512 = sand.u32 %s64, 1
        %s513 = smul.addr %s512, 8
        %s514 = scalar_lea.vmem [#allocation5], %s513
        // Predicated region
        $region73: #{tpu_custom_call.1} parent=71 // pred_check
          %p515 = pneg %p77
        $region74: #{tpu_custom_call.1} parent=71 // pred_check_branch
          %517 = sbr.rel (%p515) target = $region76
        $region75: #{tpu_custom_call.1} parent=71 // pred_region
          %518 = dma.done %s511, 128
        $region76: #{tpu_custom_call.1} parent=71 // pred_fallthru
          _
        %s519 = sand.u32 %s35, 1
        %s520 = scalar_lea.sflag [#allocation9], %s519
        %s521 = sand.u32 %s90, 1
        %s522 = smul.addr %s521, 8
        %s523 = scalar_lea.vmem [#allocation8], %s522
        // Predicated region
        $region77: #{tpu_custom_call.1} parent=71 // pred_check
          %p524 = pneg %p103
        $region78: #{tpu_custom_call.1} parent=71 // pred_check_branch
          %526 = sbr.rel (%p524) target = $region80
        $region79: #{tpu_custom_call.1} parent=71 // pred_region
          %527 = dma.done %s520, 128
        $region80: #{tpu_custom_call.1} parent=71 // pred_fallthru
          _
        // Predicated region
        $region81: #{tpu_custom_call.1} parent=71 // pred_check
          %p528 = pneg %p150
        $region82: #{tpu_custom_call.1} parent=71 // pred_check_branch
          %530 = sbr.rel (%p528) target = $region84
        $region83: #{tpu_custom_call.1} parent=71 // pred_region
          %531 = dma.done [#allocation9], 256
        $region84: #{tpu_custom_call.1} parent=71 // pred_fallthru
          _
        // Predicated region
        $region85: #{tpu_custom_call.1} parent=71 // pred_check
          %p532 = pneg %p171
        $region86: #{tpu_custom_call.1} parent=71 // pred_check_branch
          %534 = sbr.rel (%p532) target = $region88
        $region87: #{tpu_custom_call.1} parent=71 // pred_region
          %535 = dma.done [#allocation12], 16
        $region88: #{tpu_custom_call.1} parent=71 // pred_fallthru
          _
        // Predicated region
        $region89: #{tpu_custom_call.1} parent=71 // pred_check
          %p536 = pneg %p213
        $region90: #{tpu_custom_call.1} parent=71 // pred_check_branch
          %538 = sbr.rel (%p536) target = $region92
        $region91: #{tpu_custom_call.1} parent=71 // pred_region
          %539 = dma.done [#allocation12], 16
        $region92: #{tpu_custom_call.1} parent=71 // pred_fallthru
          _
        // Predicated region
        $region93: #{tpu_custom_call.1} parent=71 // pred_check
          %p540 = pneg %p234
        $region94: #{tpu_custom_call.1} parent=71 // pred_check_branch
          %542 = sbr.rel (%p540) target = $region96
        $region95: #{tpu_custom_call.1} parent=71 // pred_region
          %543 = dma.done [#allocation15], 256
        $region96: #{tpu_custom_call.1} parent=71 // pred_fallthru
          _
        // Predicated region
        $region97: #{tpu_custom_call.1} parent=71 // pred_check
          %p544 = pneg %p255
        $region98: #{tpu_custom_call.1} parent=71 // pred_check_branch
          %546 = sbr.rel (%p544) target = $region100
        $region99: #{tpu_custom_call.1} parent=71 // pred_region
          %547 = dma.done [#allocation15], 16
        $region100: #{tpu_custom_call.1} parent=71 // pred_fallthru
          _
        %s548 = sand.u32 %s64, 1
        %s549 = scalar_lea.sflag [#allocation6], %s548
        %s550 = sand.u32 %s64, 1
        %s551 = smul.addr %s550, 8
        %s552 = scalar_lea.vmem [#allocation5], %s551
        %p553 = pneg %p77
        %p554 = pneg %p74
        %s555 = sand.u32 %s35, 1
        %s556 = scalar_lea.sflag [#allocation9], %s555
        %s557 = sand.u32 %s90, 1
        %s558 = smul.addr %s557, 8
        %s559 = scalar_lea.vmem [#allocation8], %s558
        %p560 = pneg %p103
        %p561 = pneg %p100
        %p562 = scmp.lt.s32.totalorder %s40, 1
        %s563 = scalar_select %p562, %s40, 1
        %s564 = scalar_lea.vmem %s2, %s563
        %p565 = pneg %p129
        %p566 = pneg %p126
        %p567 = pneg %p150
        %p568 = pneg %p147
        %p569 = pneg %p171
        %p570 = pneg %p168
        %p571 = pneg %p192
        %p572 = pneg %p189
        %p573 = pneg %p213
        %p574 = pneg %p210
        %p575 = pneg %p234
        %p576 = pneg %p231
        %p577 = pneg %p255
        %p578 = pneg %p252
        %p579 = pneg %p276
        %p580 = pneg %p273
        %p581 = pneg %p297
        %p582 = pneg %p294
        %p583 = pneg %p318
        %p584 = pneg %p315
        %p585 = pneg %p339
        %p586 = pneg %p336
        %p587 = pneg %p367
        %p588 = pneg %p364
        %s589 = sand.u32 %s354, 1
        %s590 = scalar_lea.sflag [#allocation7], %s589
        %s591 = sand.u32 %s354, 1
        %s592 = smul.addr %s591, 8
        %s593 = scalar_lea.vmem [#allocation17], %s592
        %p594 = scmp.lt.s32.totalorder %s40, 1
        %s595 = scalar_select %p594, %s40, 1
        %s596 = scalar_lea.vmem %s2, %s595
        %p598 = scmp.eq.s32.totalorder %s42, 0
        // Predicated region
        $region101: #{tpu_custom_call.1} parent=71 // pred_check
          %p599 = pneg %p598
        $region102: #{tpu_custom_call.1} parent=71 // pred_check_branch
          %601 = sbr.rel (%p599) target = $region104
        $region103: #{tpu_custom_call.1} parent=71 // pred_region
          %vm602 = vcmask 261120
          %603 = vst.msk [vmem:[#allocation2] sm:$0xff] %vm602, 0.0
        $region104: #{tpu_custom_call.1} parent=71 // pred_fallthru
          _
        %p604 = scmp.eq.s32.totalorder %s41, 0
        // Predicated region
        $region105: #{tpu_custom_call.1} parent=71 // pred_check
          %p605 = pneg %p604
        $region106: #{tpu_custom_call.1} parent=71 // pred_check_branch
          %607 = sbr.rel (%p605) target = $region108
        $region107: #{tpu_custom_call.1} parent=71 // pred_region
          %v608 = vld [vmem:[%s523] sm:$0xff]
          %v609 = vpack.c.bf16 %v608, %v608
          %s610 = smul.u32 %s42, 4
          %s611 = smul.addr %s610, 4
          %s612 = scalar_lea.vmem %s5, %s611
          %v613 = vld [vmem:[%s612] sm:$0xf]
          %v614 = vld [vmem:[%s612 + $0x4] sm:$0xf]
          %v615 = vld [vmem:[%s612 + $0x8] sm:$0xf]
          %v616 = vld [vmem:[%s612 + $0xc] sm:$0xf]
          %s617 = scalar_lea.vmem [#allocation13], %s42
          %v618 = vld [vmem:[%s617] sm:$0x1]
          %v620 = vlaneseq
          %v621 = vshrl.u32 %v620, 7
          %v622 = vsub.s32 0, %v621
          %v623 = vrot.slane %v618, %v622
          %v629 = vunpack.c.l.b16 %v613
          %v630 = vunpack.c.l.b16 %v614
          %v631 = vunpack.c.l.b16 %v615
          %v632 = vunpack.c.l.b16 %v616
          %v633 = vpack.c.b16 %v630, %v629
          %v634 = vpack.c.b16 %v632, %v631
          %vm637 = vcmask 261120
          %v639 = vsel %vm637, %v609, 0
          %641 = vmatprep.subr.bf16.mxu0 0
          %642 = vmatpush1.bf16.msra.mxu0 %v633
          %643 = vmatprep.subr.bf16.mxu0 0
          %644 = vmatpush1.bf16.msra.mxu0 %v634
          %645 = vmatprep.subr.bf16.mxu0 0
          %646 = vmatpush1.bf16.msra.mxu0 0
          %647 = vmatprep.subr.bf16.mxu0 0
          %648 = vmatpush1.bf16.msra.mxu0 0
          %649 = vmatprep.subr.bf16.mxu0 0
          %650 = vmatpush1.bf16.msra.mxu0 0
          %651 = vmatprep.subr.bf16.mxu0 0
          %652 = vmatpush1.bf16.msra.mxu0 0
          %653 = vmatprep.subr.bf16.mxu0 0
          %654 = vmatpush1.bf16.msra.mxu0 0
          %655 = vmatprep.subr.bf16.mxu0 0
          %656 = vmatpush1.bf16.msra.mxu0 0
          %657 = vmatprep.subr.bf16.mxu0 0
          %658 = vmatpush1.bf16.msra.mxu0 0
          %659 = vmatprep.subr.bf16.mxu0 0
          %660 = vmatpush1.bf16.msra.mxu0 0
          %661 = vmatprep.subr.bf16.mxu0 0
          %662 = vmatpush1.bf16.msra.mxu0 0
          %663 = vmatprep.subr.bf16.mxu0 0
          %664 = vmatpush1.bf16.msra.mxu0 0
          %665 = vmatprep.subr.bf16.mxu0 0
          %666 = vmatpush1.bf16.msra.mxu0 0
          %667 = vmatprep.subr.bf16.mxu0 0
          %668 = vmatpush1.bf16.msra.mxu0 0
          %669 = vmatprep.subr.bf16.mxu0 0
          %670 = vmatpush1.bf16.msra.mxu0 0
          %671 = vmatprep.subr.bf16.mxu0 0
          %672 = vmatpush1.bf16.msra.mxu0 0
          %673 = vmatprep.mubr.bf16.mxu0 0
          %674 = vmatmul.mubr.bf16.gmra.mrb[0].mxu0 %v639
          %v675 = vpop.f32.mrb[0].mxu0
          %v676 = vadd.f32 %v623, %v675
          %v677 = vpop.f32.mrb[0].mxu0
          %v678 = vpop.f32.mrb[0].mxu0
          %v679 = vpop.f32.mrb[0].mxu0
          %680 = vdwg.mxu0
          %s681 = smul.addr %s610, 4
          %s682 = scalar_lea.vmem [#allocation14], %s681
          %v683 = vld [vmem:[%s682] sm:$0xf]
          %v684 = vld [vmem:[%s682 + $0x4] sm:$0xf]
          %v685 = vld [vmem:[%s682 + $0x8] sm:$0xf]
          %v686 = vld [vmem:[%s682 + $0xc] sm:$0xf]
          %s687 = scalar_lea.vmem [#allocation16], %s42
          %v688 = vld [vmem:[%s687] sm:$0x1]
          %v690 = vlaneseq
          %v691 = vshrl.u32 %v690, 7
          %v692 = vsub.s32 0, %v691
          %v693 = vrot.slane %v688, %v692
          %v699 = vunpack.c.l.b16 %v683
          %v700 = vunpack.c.l.b16 %v684
          %v701 = vunpack.c.l.b16 %v685
          %v702 = vunpack.c.l.b16 %v686
          %v703 = vpack.c.b16 %v700, %v699
          %v704 = vpack.c.b16 %v702, %v701
          %707 = vmatprep.subr.bf16.mxu0 0
          %708 = vmatpush1.bf16.msra.mxu0 %v703
          %709 = vmatprep.subr.bf16.mxu0 0
          %710 = vmatpush1.bf16.msra.mxu0 %v704
          %711 = vmatprep.subr.bf16.mxu0 0
          %712 = vmatpush1.bf16.msra.mxu0 0
          %713 = vmatprep.subr.bf16.mxu0 0
          %714 = vmatpush1.bf16.msra.mxu0 0
          %715 = vmatprep.subr.bf16.mxu0 0
          %716 = vmatpush1.bf16.msra.mxu0 0
          %717 = vmatprep.subr.bf16.mxu0 0
          %718 = vmatpush1.bf16.msra.mxu0 0
          %719 = vmatprep.subr.bf16.mxu0 0
          %720 = vmatpush1.bf16.msra.mxu0 0
          %721 = vmatprep.subr.bf16.mxu0 0
          %722 = vmatpush1.bf16.msra.mxu0 0
          %723 = vmatprep.subr.bf16.mxu0 0
          %724 = vmatpush1.bf16.msra.mxu0 0
          %725 = vmatprep.subr.bf16.mxu0 0
          %726 = vmatpush1.bf16.msra.mxu0 0
          %727 = vmatprep.subr.bf16.mxu0 0
          %728 = vmatpush1.bf16.msra.mxu0 0
          %729 = vmatprep.subr.bf16.mxu0 0
          %730 = vmatpush1.bf16.msra.mxu0 0
          %731 = vmatprep.subr.bf16.mxu0 0
          %732 = vmatpush1.bf16.msra.mxu0 0
          %733 = vmatprep.subr.bf16.mxu0 0
          %734 = vmatpush1.bf16.msra.mxu0 0
          %735 = vmatprep.subr.bf16.mxu0 0
          %736 = vmatpush1.bf16.msra.mxu0 0
          %737 = vmatprep.subr.bf16.mxu0 0
          %738 = vmatpush1.bf16.msra.mxu0 0
          %739 = vmatprep.mubr.bf16.mxu0 0
          %740 = vmatmul.mubr.bf16.gmra.mrb[0].mxu0 %v639
          %v741 = vpop.f32.mrb[0].mxu0
          %v742 = vadd.f32 %v693, %v741
          %v743 = vpop.f32.mrb[0].mxu0
          %v744 = vpop.f32.mrb[0].mxu0
          %v745 = vpop.f32.mrb[0].mxu0
          %746 = vdwg.mxu0
          %v747 = vpack.c.bf16 %v676, %v676
          %s748 = smul.addr %s42, 4
          %s749 = scalar_lea.vmem [#allocation3], %s748
          %vm750 = vcmask 257024
          %751 = vst.msk [vmem:[%s749] sm:$0xf] %vm750, %v747
          %v752 = vpack.c.bf16 %v742, %v742
          %s753 = smul.addr %s42, 4
          %s754 = scalar_lea.vmem [#allocation4], %s753
          %755 = vst.msk [vmem:[%s754] sm:$0xf] %vm750, %v752
        $region108: #{tpu_custom_call.1} parent=71 // pred_fallthru
          _
        %v756 = vld [vmem:[%s514] sm:$0xff]
        %v757 = vpack.c.bf16 %v756, %v756
        %s758 = smul.u32 %s42, 4
        %s759 = smul.addr %s758, 4
        %s760 = scalar_lea.vmem [#allocation10], %s759
        %v761 = vld [vmem:[%s760] sm:$0xf]
        %v762 = vld [vmem:[%s760 + $0x4] sm:$0xf]
        %v763 = vld [vmem:[%s760 + $0x8] sm:$0xf]
        %v764 = vld [vmem:[%s760 + $0xc] sm:$0xf]
        %s765 = scalar_lea.vmem [#allocation11], %s42
        %v766 = vld [vmem:[%s765] sm:$0x1]
        %v768 = vlaneseq
        %v769 = vshrl.u32 %v768, 7
        %v770 = vsub.s32 0, %v769
        %v771 = vrot.slane %v766, %v770
        %v777 = vunpack.c.l.b16 %v761
        %v778 = vunpack.c.l.b16 %v762
        %v779 = vunpack.c.l.b16 %v763
        %v780 = vunpack.c.l.b16 %v764
        %v781 = vpack.c.b16 %v778, %v777
        %v782 = vpack.c.b16 %v780, %v779
        %vm785 = vcmask 261120
        %v787 = vsel %vm785, %v757, 0
        %789 = vmatprep.subr.bf16.mxu0 0
        %790 = vmatpush1.bf16.msra.mxu0 %v781
        %791 = vmatprep.subr.bf16.mxu0 0
        %792 = vmatpush1.bf16.msra.mxu0 %v782
        %793 = vmatprep.subr.bf16.mxu0 0
        %794 = vmatpush1.bf16.msra.mxu0 0
        %795 = vmatprep.subr.bf16.mxu0 0
        %796 = vmatpush1.bf16.msra.mxu0 0
        %797 = vmatprep.subr.bf16.mxu0 0
        %798 = vmatpush1.bf16.msra.mxu0 0
        %799 = vmatprep.subr.bf16.mxu0 0
        %800 = vmatpush1.bf16.msra.mxu0 0
        %801 = vmatprep.subr.bf16.mxu0 0
        %802 = vmatpush1.bf16.msra.mxu0 0
        %803 = vmatprep.subr.bf16.mxu0 0
        %804 = vmatpush1.bf16.msra.mxu0 0
        %805 = vmatprep.subr.bf16.mxu0 0
        %806 = vmatpush1.bf16.msra.mxu0 0
        %807 = vmatprep.subr.bf16.mxu0 0
        %808 = vmatpush1.bf16.msra.mxu0 0
        %809 = vmatprep.subr.bf16.mxu0 0
        %810 = vmatpush1.bf16.msra.mxu0 0
        %811 = vmatprep.subr.bf16.mxu0 0
        %812 = vmatpush1.bf16.msra.mxu0 0
        %813 = vmatprep.subr.bf16.mxu0 0
        %814 = vmatpush1.bf16.msra.mxu0 0
        %815 = vmatprep.subr.bf16.mxu0 0
        %816 = vmatpush1.bf16.msra.mxu0 0
        %817 = vmatprep.subr.bf16.mxu0 0
        %818 = vmatpush1.bf16.msra.mxu0 0
        %819 = vmatprep.subr.bf16.mxu0 0
        %820 = vmatpush1.bf16.msra.mxu0 0
        %821 = vmatprep.mubr.bf16.mxu0 0
        %822 = vmatmul.mubr.bf16.gmra.mrb[0].mxu0 %v787
        %v823 = vpop.f32.mrb[0].mxu0
        %v824 = vadd.f32 %v771, %v823
        %v825 = vpop.f32.mrb[0].mxu0
        %v826 = vpop.f32.mrb[0].mxu0
        %v827 = vpop.f32.mrb[0].mxu0
        %828 = vdwg.mxu0
        %v829 = vpack.c.bf16 %v824, %v824
        %s830 = smul.addr %s42, 4
        %s831 = scalar_lea.vmem [#allocation3], %s830
        %v832 = vld [vmem:[%s831] sm:$0xf]
        %s833 = smul.addr %s42, 4
        %s834 = scalar_lea.vmem [#allocation4], %s833
        %v835 = vld [vmem:[%s834] sm:$0xf]
        %v836 = vld [vmem:[%s596] sm:$0x1]
        %v838 = vlaneseq
        %v839 = vshrl.u32 %v838, 7
        %v840 = vsub.s32 0, %v839
        %v841 = vrot.slane %v836, %v840
        %vm843 = vcmask 64512
        %v845 = vsel %vm843, %v829, 0
        %v848 = vsel %vm843, %v832, 0
        %850 = vmatprep.subr.bf16.mxu0 0
        %851 = vmatpush1.bf16.xpose.msra.mxu0 %v848
        %852 = vmatprep.subr.bf16.mxu0 0
        %853 = vmatpush1.bf16.xpose.msra.mxu0 0
        %854 = vmatprep.subr.bf16.mxu0 0
        %855 = vmatpush1.bf16.xpose.msra.mxu0 0
        %856 = vmatprep.subr.bf16.mxu0 0
        %857 = vmatpush1.bf16.xpose.msra.mxu0 0
        %858 = vmatprep.subr.bf16.mxu0 0
        %859 = vmatpush1.bf16.xpose.msra.mxu0 0
        %860 = vmatprep.subr.bf16.mxu0 0
        %861 = vmatpush1.bf16.xpose.msra.mxu0 0
        %862 = vmatprep.subr.bf16.mxu0 0
        %863 = vmatpush1.bf16.xpose.msra.mxu0 0
        %864 = vmatprep.subr.bf16.mxu0 0
        %865 = vmatpush1.bf16.xpose.msra.mxu0 0
        %866 = vmatprep.subr.bf16.mxu0 0
        %867 = vmatpush1.bf16.xpose.msra.mxu0 0
        %868 = vmatprep.subr.bf16.mxu0 0
        %869 = vmatpush1.bf16.xpose.msra.mxu0 0
        %870 = vmatprep.subr.bf16.mxu0 0
        %871 = vmatpush1.bf16.xpose.msra.mxu0 0
        %872 = vmatprep.subr.bf16.mxu0 0
        %873 = vmatpush1.bf16.xpose.msra.mxu0 0
        %874 = vmatprep.subr.bf16.mxu0 0
        %875 = vmatpush1.bf16.xpose.msra.mxu0 0
        %876 = vmatprep.subr.bf16.mxu0 0
        %877 = vmatpush1.bf16.xpose.msra.mxu0 0
        %878 = vmatprep.subr.bf16.mxu0 0
        %879 = vmatpush1.bf16.xpose.msra.mxu0 0
        %880 = vmatprep.subr.bf16.mxu0 0
        %881 = vmatpush1.bf16.xpose.msra.mxu0 0
        %882 = vmatprep.mubr.bf16.mxu0 0
        %883 = vmatmul.mubr.bf16.gmra.mrb[0].mxu0 %v845
        %v884 = vpop.f32.mrb[0].mxu0
        %v885 = vadd.f32 %v841, %v884
        %v886 = vpop.f32.mrb[0].mxu0
        %v887 = vpop.f32.mrb[0].mxu0
        %v888 = vpop.f32.mrb[0].mxu0
        %889 = vdwg.mxu0
        %v890 = vsel %vm843, %v885, -inf
        %891 = vmax.xlane.f32.xlu0 %v890
        %v892 = vpop.xlane.xlu0 %891
        %v893 = vsub.f32 %v885, %v892
        %v894 = vmul.f32 %v893, 1.442695
        %v895 = vpow.pop %v894
        %v896 = vsel %vm843, %v895, 0.0
        %897 = vadd.xlane.f32.xlu0 %v896
        %v898 = vpop.xlane.xlu0 %897
        %v899 = vrcp.pop %v898
        %v900 = vmul.f32 %v895, %v899
        %v901 = vpack.c.bf16 %v900, %v900
        %v903 = vsel %vm843, %v901, 0
        %vm905 = vcmask 1043456
        %v907 = vsel %vm905, %v835, 0
        %909 = vmatprep.subr.bf16.mxu0 0
        %910 = vmatpush1.bf16.msra.mxu0 %v907
        %911 = vmatprep.subr.bf16.mxu0 0
        %912 = vmatpush1.bf16.msra.mxu0 0
        %913 = vmatprep.subr.bf16.mxu0 0
        %914 = vmatpush1.bf16.msra.mxu0 0
        %915 = vmatprep.subr.bf16.mxu0 0
        %916 = vmatpush1.bf16.msra.mxu0 0
        %917 = vmatprep.subr.bf16.mxu0 0
        %918 = vmatpush1.bf16.msra.mxu0 0
        %919 = vmatprep.subr.bf16.mxu0 0
        %920 = vmatpush1.bf16.msra.mxu0 0
        %921 = vmatprep.subr.bf16.mxu0 0
        %922 = vmatpush1.bf16.msra.mxu0 0
        %923 = vmatprep.subr.bf16.mxu0 0
        %924 = vmatpush1.bf16.msra.mxu0 0
        %925 = vmatprep.subr.bf16.mxu0 0
        %926 = vmatpush1.bf16.msra.mxu0 0
        %927 = vmatprep.subr.bf16.mxu0 0
        %928 = vmatpush1.bf16.msra.mxu0 0
        %929 = vmatprep.subr.bf16.mxu0 0
        %930 = vmatpush1.bf16.msra.mxu0 0
        %931 = vmatprep.subr.bf16.mxu0 0
        %932 = vmatpush1.bf16.msra.mxu0 0
        %933 = vmatprep.subr.bf16.mxu0 0
        %934 = vmatpush1.bf16.msra.mxu0 0
        %935 = vmatprep.subr.bf16.mxu0 0
        %936 = vmatpush1.bf16.msra.mxu0 0
        %937 = vmatprep.subr.bf16.mxu0 0
        %938 = vmatpush1.bf16.msra.mxu0 0
        %939 = vmatprep.subr.bf16.mxu0 0
        %940 = vmatpush1.bf16.msra.mxu0 0
        %941 = vmatprep.mubr.bf16.mxu0 0
        %942 = vmatmul.mubr.bf16.gmra.mrb[0].mxu0 %v903
        %v943 = vpop.f32.mrb[0].mxu0
        %v944 = vadd.f32 0.0, %v943
        %v945 = vpop.f32.mrb[0].mxu0
        %v946 = vpop.f32.mrb[0].mxu0
        %v947 = vpop.f32.mrb[0].mxu0
        %948 = vdwg.mxu0
        %950 = vrot.lane.b32.xlu0 %v829, 120
        %v951 = vpop.permute.xlu0 %950
        %v953 = vunpack.c.l.b16 %v832
        %v954 = vpack.c.b16 %v953, %v953
        %955 = vrot.lane.b32.xlu0 %v954, 120
        %v956 = vpop.permute.xlu0 %955
        %v958 = vsel %vm843, %v951, 0
        %v961 = vsel %vm843, %v956, 0
        %963 = vmatprep.subr.bf16.mxu0 0
        %964 = vmatpush1.bf16.xpose.msra.mxu0 %v961
        %965 = vmatprep.subr.bf16.mxu0 0
        %966 = vmatpush1.bf16.xpose.msra.mxu0 0
        %967 = vmatprep.subr.bf16.mxu0 0
        %968 = vmatpush1.bf16.xpose.msra.mxu0 0
        %969 = vmatprep.subr.bf16.mxu0 0
        %970 = vmatpush1.bf16.xpose.msra.mxu0 0
        %971 = vmatprep.subr.bf16.mxu0 0
        %972 = vmatpush1.bf16.xpose.msra.mxu0 0
        %973 = vmatprep.subr.bf16.mxu0 0
        %974 = vmatpush1.bf16.xpose.msra.mxu0 0
        %975 = vmatprep.subr.bf16.mxu0 0
        %976 = vmatpush1.bf16.xpose.msra.mxu0 0
        %977 = vmatprep.subr.bf16.mxu0 0
        %978 = vmatpush1.bf16.xpose.msra.mxu0 0
        %979 = vmatprep.subr.bf16.mxu0 0
        %980 = vmatpush1.bf16.xpose.msra.mxu0 0
        %981 = vmatprep.subr.bf16.mxu0 0
        %982 = vmatpush1.bf16.xpose.msra.mxu0 0
        %983 = vmatprep.subr.bf16.mxu0 0
        %984 = vmatpush1.bf16.xpose.msra.mxu0 0
        %985 = vmatprep.subr.bf16.mxu0 0
        %986 = vmatpush1.bf16.xpose.msra.mxu0 0
        %987 = vmatprep.subr.bf16.mxu0 0
        %988 = vmatpush1.bf16.xpose.msra.mxu0 0
        %989 = vmatprep.subr.bf16.mxu0 0
        %990 = vmatpush1.bf16.xpose.msra.mxu0 0
        %991 = vmatprep.subr.bf16.mxu0 0
        %992 = vmatpush1.bf16.xpose.msra.mxu0 0
        %993 = vmatprep.subr.bf16.mxu0 0
        %994 = vmatpush1.bf16.xpose.msra.mxu0 0
        %995 = vmatprep.mubr.bf16.mxu0 0
        %996 = vmatmul.mubr.bf16.gmra.mrb[0].mxu0 %v958
        %v997 = vpop.f32.mrb[0].mxu0
        %v998 = vadd.f32 %v841, %v997
        %v999 = vpop.f32.mrb[0].mxu0
        %v1000 = vpop.f32.mrb[0].mxu0
        %v1001 = vpop.f32.mrb[0].mxu0
        %1002 = vdwg.mxu0
        %v1003 = vsel %vm843, %v998, -inf
        %1004 = vmax.xlane.f32.xlu0 %v1003
        %v1005 = vpop.xlane.xlu0 %1004
        %v1006 = vsub.f32 %v998, %v1005
        %v1007 = vmul.f32 %v1006, 1.442695
        %v1008 = vpow.pop %v1007
        %v1009 = vsel %vm843, %v1008, 0.0
        %1010 = vadd.xlane.f32.xlu0 %v1009
        %v1011 = vpop.xlane.xlu0 %1010
        %v1012 = vrcp.pop %v1011
        %v1013 = vmul.f32 %v1008, %v1012
        %v1014 = vpack.c.bf16 %v1013, %v1013
        %v1016 = vunpack.c.l.b16 %v835
        %v1017 = vpack.c.b16 %v1016, %v1016
        %1018 = vrot.lane.b32.xlu0 %v1017, 120
        %v1019 = vpop.permute.xlu0 %1018
        %v1021 = vsel %vm843, %v1014, 0
        %v1024 = vsel %vm905, %v1019, 0
        %1026 = vmatprep.subr.bf16.mxu0 0
        %1027 = vmatpush1.bf16.msra.mxu0 %v1024
        %1028 = vmatprep.subr.bf16.mxu0 0
        %1029 = vmatpush1.bf16.msra.mxu0 0
        %1030 = vmatprep.subr.bf16.mxu0 0
        %1031 = vmatpush1.bf16.msra.mxu0 0
        %1032 = vmatprep.subr.bf16.mxu0 0
        %1033 = vmatpush1.bf16.msra.mxu0 0
        %1034 = vmatprep.subr.bf16.mxu0 0
        %1035 = vmatpush1.bf16.msra.mxu0 0
        %1036 = vmatprep.subr.bf16.mxu0 0
        %1037 = vmatpush1.bf16.msra.mxu0 0
        %1038 = vmatprep.subr.bf16.mxu0 0
        %1039 = vmatpush1.bf16.msra.mxu0 0
        %1040 = vmatprep.subr.bf16.mxu0 0
        %1041 = vmatpush1.bf16.msra.mxu0 0
        %1042 = vmatprep.subr.bf16.mxu0 0
        %1043 = vmatpush1.bf16.msra.mxu0 0
        %1044 = vmatprep.subr.bf16.mxu0 0
        %1045 = vmatpush1.bf16.msra.mxu0 0
        %1046 = vmatprep.subr.bf16.mxu0 0
        %1047 = vmatpush1.bf16.msra.mxu0 0
        %1048 = vmatprep.subr.bf16.mxu0 0
        %1049 = vmatpush1.bf16.msra.mxu0 0
        %1050 = vmatprep.subr.bf16.mxu0 0
        %1051 = vmatpush1.bf16.msra.mxu0 0
        %1052 = vmatprep.subr.bf16.mxu0 0
        %1053 = vmatpush1.bf16.msra.mxu0 0
        %1054 = vmatprep.subr.bf16.mxu0 0
        %1055 = vmatpush1.bf16.msra.mxu0 0
        %1056 = vmatprep.subr.bf16.mxu0 0
        %1057 = vmatpush1.bf16.msra.mxu0 0
        %1058 = vmatprep.mubr.bf16.mxu0 0
        %1059 = vmatmul.mubr.bf16.gmra.mrb[0].mxu0 %v1021
        %v1060 = vpop.f32.mrb[0].mxu0
        %v1061 = vadd.f32 0.0, %v1060
        %v1062 = vpop.f32.mrb[0].mxu0
        %v1063 = vpop.f32.mrb[0].mxu0
        %v1064 = vpop.f32.mrb[0].mxu0
        %1065 = vdwg.mxu0
        %1066 = vrot.lane.b32.xlu0 %v829, 112
        %v1067 = vpop.permute.xlu0 %1066
        %1068 = vrot.lane.b32.xlu0 %v954, 112
        %v1069 = vpop.permute.xlu0 %1068
        %v1071 = vsel %vm843, %v1067, 0
        %v1074 = vsel %vm843, %v1069, 0
        %1076 = vmatprep.subr.bf16.mxu0 0
        %1077 = vmatpush1.bf16.xpose.msra.mxu0 %v1074
        %1078 = vmatprep.subr.bf16.mxu0 0
        %1079 = vmatpush1.bf16.xpose.msra.mxu0 0
        %1080 = vmatprep.subr.bf16.mxu0 0
        %1081 = vmatpush1.bf16.xpose.msra.mxu0 0
        %1082 = vmatprep.subr.bf16.mxu0 0
        %1083 = vmatpush1.bf16.xpose.msra.mxu0 0
        %1084 = vmatprep.subr.bf16.mxu0 0
        %1085 = vmatpush1.bf16.xpose.msra.mxu0 0
        %1086 = vmatprep.subr.bf16.mxu0 0
        %1087 = vmatpush1.bf16.xpose.msra.mxu0 0
        %1088 = vmatprep.subr.bf16.mxu0 0
        %1089 = vmatpush1.bf16.xpose.msra.mxu0 0
        %1090 = vmatprep.subr.bf16.mxu0 0
        %1091 = vmatpush1.bf16.xpose.msra.mxu0 0
        %1092 = vmatprep.subr.bf16.mxu0 0
        %1093 = vmatpush1.bf16.xpose.msra.mxu0 0
        %1094 = vmatprep.subr.bf16.mxu0 0
        %1095 = vmatpush1.bf16.xpose.msra.mxu0 0
        %1096 = vmatprep.subr.bf16.mxu0 0
        %1097 = vmatpush1.bf16.xpose.msra.mxu0 0
        %1098 = vmatprep.subr.bf16.mxu0 0
        %1099 = vmatpush1.bf16.xpose.msra.mxu0 0
        %1100 = vmatprep.subr.bf16.mxu0 0
        %1101 = vmatpush1.bf16.xpose.msra.mxu0 0
        %1102 = vmatprep.subr.bf16.mxu0 0
        %1103 = vmatpush1.bf16.xpose.msra.mxu0 0
        %1104 = vmatprep.subr.bf16.mxu0 0
        %1105 = vmatpush1.bf16.xpose.msra.mxu0 0
        %1106 = vmatprep.subr.bf16.mxu0 0
        %1107 = vmatpush1.bf16.xpose.msra.mxu0 0
        %1108 = vmatprep.mubr.bf16.mxu0 0
        %1109 = vmatmul.mubr.bf16.gmra.mrb[0].mxu0 %v1071
        %v1110 = vpop.f32.mrb[0].mxu0
        %v1111 = vadd.f32 %v841, %v1110
        %v1112 = vpop.f32.mrb[0].mxu0
        %v1113 = vpop.f32.mrb[0].mxu0
        %v1114 = vpop.f32.mrb[0].mxu0
        %1115 = vdwg.mxu0
        %v1116 = vsel %vm843, %v1111, -inf
        %1117 = vmax.xlane.f32.xlu0 %v1116
        %v1118 = vpop.xlane.xlu0 %1117
        %v1119 = vsub.f32 %v1111, %v1118
        %v1120 = vmul.f32 %v1119, 1.442695
        %v1121 = vpow.pop %v1120
        %v1122 = vsel %vm843, %v1121, 0.0
        %1123 = vadd.xlane.f32.xlu0 %v1122
        %v1124 = vpop.xlane.xlu0 %1123
        %v1125 = vrcp.pop %v1124
        %v1126 = vmul.f32 %v1121, %v1125
        %v1127 = vpack.c.bf16 %v1126, %v1126
        %1128 = vrot.lane.b32.xlu0 %v1017, 112
        %v1129 = vpop.permute.xlu0 %1128
        %v1131 = vsel %vm843, %v1127, 0
        %v1134 = vsel %vm905, %v1129, 0
        %1136 = vmatprep.subr.bf16.mxu0 0
        %1137 = vmatpush1.bf16.msra.mxu0 %v1134
        %1138 = vmatprep.subr.bf16.mxu0 0
        %1139 = vmatpush1.bf16.msra.mxu0 0
        %1140 = vmatprep.subr.bf16.mxu0 0
        %1141 = vmatpush1.bf16.msra.mxu0 0
        %1142 = vmatprep.subr.bf16.mxu0 0
        %1143 = vmatpush1.bf16.msra.mxu0 0
        %1144 = vmatprep.subr.bf16.mxu0 0
        %1145 = vmatpush1.bf16.msra.mxu0 0
        %1146 = vmatprep.subr.bf16.mxu0 0
        %1147 = vmatpush1.bf16.msra.mxu0 0
        %1148 = vmatprep.subr.bf16.mxu0 0
        %1149 = vmatpush1.bf16.msra.mxu0 0
        %1150 = vmatprep.subr.bf16.mxu0 0
        %1151 = vmatpush1.bf16.msra.mxu0 0
        %1152 = vmatprep.subr.bf16.mxu0 0
        %1153 = vmatpush1.bf16.msra.mxu0 0
        %1154 = vmatprep.subr.bf16.mxu0 0
        %1155 = vmatpush1.bf16.msra.mxu0 0
        %1156 = vmatprep.subr.bf16.mxu0 0
        %1157 = vmatpush1.bf16.msra.mxu0 0
        %1158 = vmatprep.subr.bf16.mxu0 0
        %1159 = vmatpush1.bf16.msra.mxu0 0
        %1160 = vmatprep.subr.bf16.mxu0 0
        %1161 = vmatpush1.bf16.msra.mxu0 0
        %1162 = vmatprep.subr.bf16.mxu0 0
        %1163 = vmatpush1.bf16.msra.mxu0 0
        %1164 = vmatprep.subr.bf16.mxu0 0
        %1165 = vmatpush1.bf16.msra.mxu0 0
        %1166 = vmatprep.subr.bf16.mxu0 0
        %1167 = vmatpush1.bf16.msra.mxu0 0
        %1168 = vmatprep.mubr.bf16.mxu0 0
        %1169 = vmatmul.mubr.bf16.gmra.mrb[0].mxu0 %v1131
        %v1170 = vpop.f32.mrb[0].mxu0
        %v1171 = vadd.f32 0.0, %v1170
        %v1172 = vpop.f32.mrb[0].mxu0
        %v1173 = vpop.f32.mrb[0].mxu0
        %v1174 = vpop.f32.mrb[0].mxu0
        %1175 = vdwg.mxu0
        %1176 = vrot.lane.b32.xlu0 %v829, 104
        %v1177 = vpop.permute.xlu0 %1176
        %1178 = vrot.lane.b32.xlu0 %v954, 104
        %v1179 = vpop.permute.xlu0 %1178
        %v1181 = vsel %vm843, %v1177, 0
        %v1184 = vsel %vm843, %v1179, 0
        %1186 = vmatprep.subr.bf16.mxu0 0
        %1187 = vmatpush1.bf16.xpose.msra.mxu0 %v1184
        %1188 = vmatprep.subr.bf16.mxu0 0
        %1189 = vmatpush1.bf16.xpose.msra.mxu0 0
        %1190 = vmatprep.subr.bf16.mxu0 0
        %1191 = vmatpush1.bf16.xpose.msra.mxu0 0
        %1192 = vmatprep.subr.bf16.mxu0 0
        %1193 = vmatpush1.bf16.xpose.msra.mxu0 0
        %1194 = vmatprep.subr.bf16.mxu0 0
        %1195 = vmatpush1.bf16.xpose.msra.mxu0 0
        %1196 = vmatprep.subr.bf16.mxu0 0
        %1197 = vmatpush1.bf16.xpose.msra.mxu0 0
        %1198 = vmatprep.subr.bf16.mxu0 0
        %1199 = vmatpush1.bf16.xpose.msra.mxu0 0
        %1200 = vmatprep.subr.bf16.mxu0 0
        %1201 = vmatpush1.bf16.xpose.msra.mxu0 0
        %1202 = vmatprep.subr.bf16.mxu0 0
        %1203 = vmatpush1.bf16.xpose.msra.mxu0 0
        %1204 = vmatprep.subr.bf16.mxu0 0
        %1205 = vmatpush1.bf16.xpose.msra.mxu0 0
        %1206 = vmatprep.subr.bf16.mxu0 0
        %1207 = vmatpush1.bf16.xpose.msra.mxu0 0
        %1208 = vmatprep.subr.bf16.mxu0 0
        %1209 = vmatpush1.bf16.xpose.msra.mxu0 0
        %1210 = vmatprep.subr.bf16.mxu0 0
        %1211 = vmatpush1.bf16.xpose.msra.mxu0 0
        %1212 = vmatprep.subr.bf16.mxu0 0
        %1213 = vmatpush1.bf16.xpose.msra.mxu0 0
        %1214 = vmatprep.subr.bf16.mxu0 0
        %1215 = vmatpush1.bf16.xpose.msra.mxu0 0
        %1216 = vmatprep.subr.bf16.mxu0 0
        %1217 = vmatpush1.bf16.xpose.msra.mxu0 0
        %1218 = vmatprep.mubr.bf16.mxu0 0
        %1219 = vmatmul.mubr.bf16.gmra.mrb[0].mxu0 %v1181
        %v1220 = vpop.f32.mrb[0].mxu0
        %v1221 = vadd.f32 %v841, %v1220
        %v1222 = vpop.f32.mrb[0].mxu0
        %v1223 = vpop.f32.mrb[0].mxu0
        %v1224 = vpop.f32.mrb[0].mxu0
        %1225 = vdwg.mxu0
        %v1226 = vsel %vm843, %v1221, -inf
        %1227 = vmax.xlane.f32.xlu0 %v1226
        %v1228 = vpop.xlane.xlu0 %1227
        %v1229 = vsub.f32 %v1221, %v1228
        %v1230 = vmul.f32 %v1229, 1.442695
        %v1231 = vpow.pop %v1230
        %v1232 = vsel %vm843, %v1231, 0.0
        %1233 = vadd.xlane.f32.xlu0 %v1232
        %v1234 = vpop.xlane.xlu0 %1233
        %v1235 = vrcp.pop %v1234
        %v1236 = vmul.f32 %v1231, %v1235
        %v1237 = vpack.c.bf16 %v1236, %v1236
        %1238 = vrot.lane.b32.xlu0 %v1017, 104
        %v1239 = vpop.permute.xlu0 %1238
        %v1241 = vsel %vm843, %v1237, 0
        %v1244 = vsel %vm905, %v1239, 0
        %1246 = vmatprep.subr.bf16.mxu0 0
        %1247 = vmatpush1.bf16.msra.mxu0 %v1244
        %1248 = vmatprep.subr.bf16.mxu0 0
        %1249 = vmatpush1.bf16.msra.mxu0 0
        %1250 = vmatprep.subr.bf16.mxu0 0
        %1251 = vmatpush1.bf16.msra.mxu0 0
        %1252 = vmatprep.subr.bf16.mxu0 0
        %1253 = vmatpush1.bf16.msra.mxu0 0
        %1254 = vmatprep.subr.bf16.mxu0 0
        %1255 = vmatpush1.bf16.msra.mxu0 0
        %1256 = vmatprep.subr.bf16.mxu0 0
        %1257 = vmatpush1.bf16.msra.mxu0 0
        %1258 = vmatprep.subr.bf16.mxu0 0
        %1259 = vmatpush1.bf16.msra.mxu0 0
        %1260 = vmatprep.subr.bf16.mxu0 0
        %1261 = vmatpush1.bf16.msra.mxu0 0
        %1262 = vmatprep.subr.bf16.mxu0 0
        %1263 = vmatpush1.bf16.msra.mxu0 0
        %1264 = vmatprep.subr.bf16.mxu0 0
        %1265 = vmatpush1.bf16.msra.mxu0 0
        %1266 = vmatprep.subr.bf16.mxu0 0
        %1267 = vmatpush1.bf16.msra.mxu0 0
        %1268 = vmatprep.subr.bf16.mxu0 0
        %1269 = vmatpush1.bf16.msra.mxu0 0
        %1270 = vmatprep.subr.bf16.mxu0 0
        %1271 = vmatpush1.bf16.msra.mxu0 0
        %1272 = vmatprep.subr.bf16.mxu0 0
        %1273 = vmatpush1.bf16.msra.mxu0 0
        %1274 = vmatprep.subr.bf16.mxu0 0
        %1275 = vmatpush1.bf16.msra.mxu0 0
        %1276 = vmatprep.subr.bf16.mxu0 0
        %1277 = vmatpush1.bf16.msra.mxu0 0
        %1278 = vmatprep.mubr.bf16.mxu0 0
        %1279 = vmatmul.mubr.bf16.gmra.mrb[0].mxu0 %v1241
        %v1280 = vpop.f32.mrb[0].mxu0
        %v1281 = vadd.f32 0.0, %v1280
        %v1282 = vpop.f32.mrb[0].mxu0
        %v1283 = vpop.f32.mrb[0].mxu0
        %v1284 = vpop.f32.mrb[0].mxu0
        %1285 = vdwg.mxu0
        %1287 = vrot.lane.b32.xlu0 %v1061, 8
        %v1288 = vpop.permute.xlu0 %1287
        %1291 = vrot.lane.b32.xlu0 %v1171, 16
        %v1292 = vpop.permute.xlu0 %1291
        %1295 = vrot.lane.b32.xlu0 %v1281, 24
        %v1296 = vpop.permute.xlu0 %1295
        %v1298 = vsel %vm843, %v944, %v1288
        %vm1299 = vcmask 130048
        %v1300 = vsel %vm1299, %v1298, %v1292
        %vm1301 = vcmask 195584
        %v1302 = vsel %vm1301, %v1300, %v1296
        %v1303 = vld [vmem:[#allocation2] sm:$0xff]
        %v1304 = vpack.c.bf16 %v1302, %v1302
        %s1305 = smul.addr %s758, 4
        %s1306 = scalar_lea.vmem %s9, %s1305
        %v1307 = vld [vmem:[%s1306] sm:$0xf]
        %v1308 = vld [vmem:[%s1306 + $0x4] sm:$0xf]
        %v1309 = vld [vmem:[%s1306 + $0x8] sm:$0xf]
        %v1310 = vld [vmem:[%s1306 + $0xc] sm:$0xf]
        %v1315 = vunpack.c.l.b16 %v1307
        %v1316 = vunpack.c.l.b16 %v1308
        %v1317 = vunpack.c.l.b16 %v1309
        %v1318 = vunpack.c.l.b16 %v1310
        %v1319 = vpack.c.b16 %v1316, %v1315
        %v1320 = vpack.c.b16 %v1318, %v1317
        %v1324 = vsel %vm785, %v1304, 0
        %1326 = vmatprep.subr.bf16.mxu0 0
        %1327 = vmatpush1.bf16.msra.mxu0 %v1319
        %1328 = vmatprep.subr.bf16.mxu0 0
        %1329 = vmatpush1.bf16.msra.mxu0 %v1320
        %1330 = vmatprep.subr.bf16.mxu0 0
        %1331 = vmatpush1.bf16.msra.mxu0 0
        %1332 = vmatprep.subr.bf16.mxu0 0
        %1333 = vmatpush1.bf16.msra.mxu0 0
        %1334 = vmatprep.subr.bf16.mxu0 0
        %1335 = vmatpush1.bf16.msra.mxu0 0
        %1336 = vmatprep.subr.bf16.mxu0 0
        %1337 = vmatpush1.bf16.msra.mxu0 0
        %1338 = vmatprep.subr.bf16.mxu0 0
        %1339 = vmatpush1.bf16.msra.mxu0 0
        %1340 = vmatprep.subr.bf16.mxu0 0
        %1341 = vmatpush1.bf16.msra.mxu0 0
        %1342 = vmatprep.subr.bf16.mxu0 0
        %1343 = vmatpush1.bf16.msra.mxu0 0
        %1344 = vmatprep.subr.bf16.mxu0 0
        %1345 = vmatpush1.bf16.msra.mxu0 0
        %1346 = vmatprep.subr.bf16.mxu0 0
        %1347 = vmatpush1.bf16.msra.mxu0 0
        %1348 = vmatprep.subr.bf16.mxu0 0
        %1349 = vmatpush1.bf16.msra.mxu0 0
        %1350 = vmatprep.subr.bf16.mxu0 0
        %1351 = vmatpush1.bf16.msra.mxu0 0
        %1352 = vmatprep.subr.bf16.mxu0 0
        %1353 = vmatpush1.bf16.msra.mxu0 0
        %1354 = vmatprep.subr.bf16.mxu0 0
        %1355 = vmatpush1.bf16.msra.mxu0 0
        %1356 = vmatprep.subr.bf16.mxu0 0
        %1357 = vmatpush1.bf16.msra.mxu0 0
        %1358 = vmatprep.mubr.bf16.mxu0 0
        %1359 = vmatmul.mubr.bf16.gmra.mrb[0].mxu0 %v1324
        %v1360 = vpop.f32.mrb[0].mxu0
        %v1361 = vadd.f32 0.0, %v1360
        %v1362 = vpop.f32.mrb[0].mxu0
        %v1363 = vpop.f32.mrb[0].mxu0
        %v1364 = vpop.f32.mrb[0].mxu0
        %1365 = vdwg.mxu0
        %v1366 = vadd.f32 %v1303, %v1361
        %1367 = vst.msk [vmem:[#allocation2] sm:$0xff] %vm785, %v1366
        // Predicated region
        $region109: #{tpu_custom_call.1} parent=71 // pred_check
          %p1368 = pneg %p598
        $region110: #{tpu_custom_call.1} parent=71 // pred_check_branch
          %1370 = sbr.rel (%p1368) target = $region112
        $region111: #{tpu_custom_call.1} parent=71 // pred_region
          %v1371 = vld [vmem:[#allocation2] sm:$0xff]
          %v1372 = vld [vmem:[%s10] sm:$0x1]
          %v1374 = vlaneseq
          %v1375 = vshrl.u32 %v1374, 7
          %v1376 = vsub.s32 0, %v1375
          %v1377 = vrot.slane %v1372, %v1376
          %v1379 = vadd.f32 %v1371, %v1377
          %v1380 = vld [vmem:[%s514] sm:$0xff]
          %v1381 = vadd.f32 %v1379, %v1380
          %v1382 = vsel %vm785, %v1381, 0.0
          %1383 = vadd.xlane.f32.xlu0 %v1382
          %v1384 = vpop.xlane.xlu0 %1383
          %v1385 = vrcp.pop 32.0
          %v1386 = vmul.f32 %v1384, %v1385
          %v1387 = vsub.f32 %v1381, %v1386
          %v1388 = vmul.f32 %v1387, %v1387
          %v1389 = vsel %vm785, %v1388, 0.0
          %1390 = vadd.xlane.f32.xlu0 %v1389
          %v1391 = vpop.xlane.xlu0 %1390
          %v1392 = vmul.f32 %v1391, %v1385
          %v1393 = vadd.f32 %v1392, 1e-12
          %v1394 = vrsqrt.pop %v1393
          %v1395 = vmul.f32 %v1387, %v1394
          %v1396 = vld [vmem:[%s11] sm:$0x1]
          %v1398 = vlaneseq
          %v1399 = vshrl.u32 %v1398, 7
          %v1400 = vsub.s32 0, %v1399
          %v1401 = vrot.slane %v1396, %v1400
          %v1403 = vmul.f32 %v1401, %v1395
          %v1404 = vld [vmem:[%s12] sm:$0x1]
          %v1406 = vlaneseq
          %v1407 = vshrl.u32 %v1406, 7
          %v1408 = vsub.s32 0, %v1407
          %v1409 = vrot.slane %v1404, %v1408
          %v1411 = vadd.f32 %v1403, %v1409
          %1412 = vst.msk [vmem:[%s593] sm:$0xff] %vm785, %v1411
        $region112: #{tpu_custom_call.1} parent=71 // pred_fallthru
          _
        %s1413 = sand.u32 %s354, 1
        %s1414 = scalar_lea.sflag [#allocation7], %s1413
        %s1415 = sand.u32 %s354, 1
        %s1416 = smul.addr %s1415, 8
        %s1417 = scalar_lea.vmem [#allocation17], %s1416
        // Predicated region
        $region113: #{tpu_custom_call.1} parent=71 // pred_check
          %p1418 = pneg %p364
        $region114: #{tpu_custom_call.1} parent=71 // pred_check_branch
          %1420 = sbr.rel (%p1418) target = $region116
        $region115: #{tpu_custom_call.1} parent=71 // pred_region
          %s1422 = ssub.s32 128, 128
          %1423 = vsyncadd %s1414, %s1422
          %s1424 = sadd.s32 %s41, %s40
          %s1425 = smul.addr %s1424, 128
          %s1426 = scalar_lea.hbm %s13, %s1425
          %s1428 = sshll.u32 %s1417, 4
          %s1429 = int_to_ptr.vmem [resolvable:$true] %s1428
          %1431 = dma.vmem_to_hbm [thread:$0]  %s1429, 128, %s1426, %s1414
        $region116: #{tpu_custom_call.1} parent=71 // pred_fallthru
          _
      $region72: #{tpu_custom_call.1} parent=5 // pred_fallthru
        _
      %p1432 = scmp.le.s32.totalorder 2, %s30
      // Predicated region
      $region117: #{tpu_custom_call.1} parent=5 // pred_check
        %p1433 = pneg %p1432
      $region118: #{tpu_custom_call.1} parent=5 // pred_check_branch
        %1435 = sbr.rel (%p1433) target = $region120
      $region119: #{tpu_custom_call.1} parent=5 // pred_region
        %s1436 = ssub.s32 %s30, 2
        // Predicated region
        $region121: #{tpu_custom_call.1} parent=119 // pred_check
          %p1437 = pneg %p370
        $region122: #{tpu_custom_call.1} parent=119 // pred_check_branch
          %1439 = sbr.rel (%p1437) target = $region124
        $region123: #{tpu_custom_call.1} parent=119 // pred_region
          %s1440 = sand.u32 %s355, 1
          %s1441 = scalar_lea.sflag [#allocation7], %s1440
          %s1442 = sand.u32 %s355, 1
          %s1443 = smul.addr %s1442, 8
          %s1444 = scalar_lea.vmem [#allocation17], %s1443
          %1445 = dma.done %s1441, 128
        $region124: #{tpu_custom_call.1} parent=119 // pred_fallthru
          _
      $region120: #{tpu_custom_call.1} parent=5 // pred_fallthru
        _
    $region6: #{tpu_custom_call.1} parent=1 // loop_footer
      %s34 = sadd.s32 1, %s30
    $region7: #{tpu_custom_call.1} parent=1 // loop_footer_branch
      %29 = sbr.rel target = $region3
    $region8: #{tpu_custom_call.1} parent=1 // loop_exit
      _
    %1446 = vsyncpa [#allocation6], 1
    %s1447 = scalar_lea.sflag [#allocation6], 1
    %1448 = vsyncpa %s1447, 1
    %1449 = vsyncpa [#allocation9], 1
    %s1450 = scalar_lea.sflag [#allocation9], 1
    %1451 = vsyncpa %s1450, 1
    %1452 = vsyncpa [#allocation12], 1
    %1453 = vsyncpa [#allocation15], 1
    %1454 = vsyncpa [#allocation7], 1
    %s1455 = scalar_lea.sflag [#allocation7], 1
    %1456 = vsyncpa %s1455, 1

</llo_original>
